<compile_context>
chip_gen: v5e
topology: v5e:2x2
jax: 0.10.0
libtpu: 0.0.40
codegen_flags: <defaults>
</compile_context>

<pallas_src>
import functools

import jax
import jax.numpy as jnp
from jax.experimental import pallas as pl
from jax.experimental.pallas import tpu as pltpu

_BN_EPS = 1e-5
_LANE = 128


def _round_up(x, m):
    return ((x + m - 1) // m) * m


# ---------------------------------------------------------------------------
# Kernel bodies (single fused pallas_call; activations stay in VMEM/vregs)
# ---------------------------------------------------------------------------
def _mlp_trunk(x, w_ref, g_ref, bt_ref):
    """L x (Linear(no bias) -> batch-stat BN -> ReLU), statically unrolled.

    The Linear bias is omitted: training-mode BN subtracts the per-feature
    batch mean immediately afterwards, so a constant per-feature shift cancels
    exactly.  Dropout(p=0) is the identity and is elided.
    """
    n_rows = x.shape[0]                                  # static
    inv_n = 1.0 / float(n_rows)
    h = x                                                # (N, Fp) f32
    num_layers = w_ref.shape[0]                          # static, small
    for l in range(num_layers):                          # static unroll (L=5)
        # MXU: bf16 operands, f32 accumulation.
        z = jnp.dot(h.astype(jnp.bfloat16), w_ref[l],
                    preferred_element_type=jnp.float32)  # (N, Fp) f32
        # One-pass BN batch statistics (biased variance), clamped at 0.
        mean = jnp.sum(z, axis=0, keepdims=True) * inv_n           # (1, Fp)
        ex2 = jnp.sum(z * z, axis=0, keepdims=True) * inv_n        # (1, Fp)
        var = jnp.maximum(ex2 - mean * mean, 0.0)
        scale = g_ref[l] * jax.lax.rsqrt(var + _BN_EPS)  # gamma folded in
        shift = bt_ref[l] - mean * scale                 # mean folded in
        h = jnp.maximum(z * scale + shift, 0.0)          # affine + ReLU
    return h


def _mlp_head_kernel(x_ref, w_ref, g_ref, bt_ref, wh_ref, bh_ref, o_ref):
    h = _mlp_trunk(x_ref[0], w_ref, g_ref, bt_ref)
    # Head Linear(emb -> 1): VPU broadcast-multiply + lane reduce in f32
    # (avoids a 1-lane MXU matmul).
    y = jnp.sum(h * wh_ref[...].astype(jnp.float32), axis=-1, keepdims=True)
    y = y + bh_ref[...]
    o_ref[0] = jnp.clip(y, 0.0, 50.0)                    # (N, 1)


def _mlp_trunk_kernel(x_ref, w_ref, g_ref, bt_ref, o_ref):
    # multi_model=True path: return the (padded) embedding; wrapper slices it.
    o_ref[0] = _mlp_trunk(x_ref[0], w_ref, g_ref, bt_ref)


# ---------------------------------------------------------------------------
# Parameter construction (torch-like, unpadded) and packing for the kernel
# ---------------------------------------------------------------------------
def init_mlp_params(key, input_dim=44, num_mlp_layers=5, emb_dim=200,
                    multi_model=False):
    """Deterministic synthetic parameters, laid out like torch (in, out)."""
    params = []
    dims = [input_dim] + [emb_dim] * num_mlp_layers
    for i in range(num_mlp_layers):
        key, kw, kb, kg, kbt = jax.random.split(key, 5)
        f_in, f_out = dims[i], dims[i + 1]
        params.append({
            "w": jax.random.normal(kw, (f_in, f_out), jnp.float32) * 0.05,
            "b": jax.random.normal(kb, (1, f_out), jnp.float32) * 0.05,
            "gamma": 1.0 + 0.1 * jax.random.normal(kg, (1, f_out), jnp.float32),
            "beta": 0.1 * jax.random.normal(kbt, (1, f_out), jnp.float32),
        })
    head = None
    if not multi_model:
        key, kw, kb = jax.random.split(key, 3)
        head = {"w": jax.random.normal(kw, (emb_dim, 1), jnp.float32) * 0.05,
                "b": jax.random.normal(kb, (1, 1), jnp.float32) * 0.05}
    return {"layers": params, "head": head}


def pack_params(params):
    """Stack + zero-pad parameters to 128-lane multiples; weights as bf16.

    Padded gamma/beta lanes are 0, so padded features stay exactly 0 through
    every BN/ReLU and contribute nothing to later matmuls or the head reduce.
    The per-layer Linear bias is intentionally not packed (BN cancels it).
    """
    layers = params["layers"]
    emb_dim = layers[0]["w"].shape[1]
    in_dim = layers[0]["w"].shape[0]
    fp = _round_up(max(emb_dim, in_dim), _LANE)          # 256 for (44, 200)

    w_stack, g_stack, bt_stack = [], [], []
    for layer in layers:
        w = layer["w"]
        w_pad = jnp.pad(w, ((0, fp - w.shape[0]), (0, fp - w.shape[1])))
        w_stack.append(w_pad.astype(jnp.bfloat16))       # MXU operand: bf16
        g_stack.append(jnp.pad(layer["gamma"], ((0, 0), (0, fp - emb_dim))))
        bt_stack.append(jnp.pad(layer["beta"], ((0, 0), (0, fp - emb_dim))))

    packed = {
        "w": jnp.stack(w_stack),        # (L, Fp, Fp) bf16
        "gamma": jnp.stack(g_stack),    # (L, 1, Fp)  f32
        "beta": jnp.stack(bt_stack),    # (L, 1, Fp)  f32
    }
    if params["head"] is not None:
        wh = params["head"]["w"]                                     # (emb, 1)
        packed["w_head"] = jnp.pad(
            wh.T, ((0, 0), (0, fp - emb_dim))).astype(jnp.bfloat16)  # (1, Fp)
        packed["b_head"] = params["head"]["b"]                       # (1, 1) f32
    return packed


# ---------------------------------------------------------------------------
# Forward pass (single fused pallas_call, grid over independent batch groups)
# ---------------------------------------------------------------------------
@functools.partial(jax.jit, static_argnames=("emb_dim", "multi_model"))
def mlp_forward_grouped(packed, x_groups, emb_dim=200, multi_model=False):
    """x_groups: (G, N, in_dim).  Each group is one complete BatchNorm batch."""
    g, n, in_dim = x_groups.shape
    num_layers, fp = packed["w"].shape[0], packed["w"].shape[-1]
    xp = jnp.pad(x_groups.astype(jnp.float32),
                 ((0, 0), (0, 0), (0, fp - in_dim)))     # (G, N, Fp)

    # Weight-like operands stay resident across the group grid (block 0).
    const3 = lambda gi: (0, 0, 0)
    const2 = lambda gi: (0, 0)
    x_spec = pl.BlockSpec((1, n, fp), lambda gi: (gi, 0, 0))
    weight_specs = [
        pl.BlockSpec((num_layers, fp, fp), const3),      # w (bf16)
        pl.BlockSpec((num_layers, 1, fp), const3),       # gamma
        pl.BlockSpec((num_layers, 1, fp), const3),       # beta
    ]

    out_cols = fp if multi_model else 1
    # Explicit VMEM budget (v7x: 64 MiB physical): resident weights (x2 for
    # buffering), streamed x/out blocks (x2), plus activation temporaries.
    def _nbytes(a):
        return a.size * a.dtype.itemsize
    resident = _nbytes(packed["w"]) + _nbytes(packed["gamma"]) + _nbytes(packed["beta"])
    if not multi_model:
        resident += _nbytes(packed["w_head"]) + _nbytes(packed["b_head"])
    vmem_bytes = int(2 * resident
                     + 2 * (n * fp * 4) + 2 * (n * out_cols * 4)
                     + 8 * (n * fp * 4)
                     + (2 << 20))
    vmem_bytes = min(max(vmem_bytes, 16 << 20), 64 << 20)

    compiler_params = pltpu.CompilerParams(
        dimension_semantics=("parallel",),               # groups independent
        vmem_limit_bytes=vmem_bytes)

    flops = g * (2 * n * fp * fp * num_layers + 2 * n * fp)
    transcendentals = g * num_layers * fp                # rsqrt per feature/layer
    bytes_accessed = int(resident + g * (n * fp * 4 + n * out_cols * 4))
    cost = pl.CostEstimate(flops=flops, transcendentals=transcendentals,
                           bytes_accessed=bytes_accessed)

    if multi_model:
        out = pl.pallas_call(
            _mlp_trunk_kernel,
            grid=(g,),
            out_shape=jax.ShapeDtypeStruct((g, n, fp), jnp.float32),
            in_specs=[x_spec] + weight_specs,
            out_specs=pl.BlockSpec((1, n, fp), lambda gi: (gi, 0, 0)),
            compiler_params=compiler_params,
            cost_estimate=cost,
        )(xp, packed["w"], packed["gamma"], packed["beta"])
        return out[:, :, :emb_dim]

    out = pl.pallas_call(
        _mlp_head_kernel,
        grid=(g,),
        out_shape=jax.ShapeDtypeStruct((g, n, 1), jnp.float32),
        in_specs=[x_spec] + weight_specs + [
            pl.BlockSpec((1, fp), const2),               # w_head (bf16)
            pl.BlockSpec((1, 1), const2),                # b_head
        ],
        out_specs=pl.BlockSpec((1, n, 1), lambda gi: (gi, 0, 0)),
        compiler_params=compiler_params,
        cost_estimate=cost,
    )(xp, packed["w"], packed["gamma"], packed["beta"],
      packed["w_head"], packed["b_head"])
    return out


def mlp_forward(packed, x, emb_dim=200, multi_model=False):
    """Module-equivalent single-batch forward: x (N, in_dim)."""
    out = mlp_forward_grouped(packed, x[None], emb_dim=emb_dim,
                              multi_model=multi_model)
    return out[0]


# ---------------------------------------------------------------------------
# Pure-JAX references
# ---------------------------------------------------------------------------
def mlp_forward_ref(params, x, multi_model=False):
    """f32 torch-equivalent math (keeps the Linear bias)."""
    h = x.astype(jnp.float32)
    for layer in params["layers"]:
        h = h @ layer["w"] + layer["b"]
        mean = jnp.mean(h, axis=0, keepdims=True)
        var = jnp.mean((h - mean) ** 2, axis=0, keepdims=True)
        h = (h - mean) / jnp.sqrt(var + _BN_EPS)
        h = jnp.maximum(h * layer["gamma"] + layer["beta"], 0.0)
    if multi_model:
        return h
    head = params["head"]
    return jnp.clip(h @ head["w"] + head["b"], 0.0, 50.0)


def mlp_forward_ref_bf16(params, x, multi_model=False):
    """Same math with bf16 matmul operands / f32 accumulation (kernel numerics)."""
    h = x.astype(jnp.float32)
    for layer in params["layers"]:
        z = jnp.dot(h.astype(jnp.bfloat16), layer["w"].astype(jnp.bfloat16),
                    preferred_element_type=jnp.float32) + layer["b"]
        mean = jnp.mean(z, axis=0, keepdims=True)
        var = jnp.maximum(jnp.mean(z * z, axis=0, keepdims=True) - mean * mean, 0.0)
        scale = layer["gamma"] * jax.lax.rsqrt(var + _BN_EPS)
        h = jnp.maximum((z - mean) * scale + layer["beta"], 0.0)
    if multi_model:
        return h
    head = params["head"]
    wh = head["w"].astype(jnp.bfloat16).astype(jnp.float32)
    return jnp.clip(h @ wh + head["b"], 0.0, 50.0)


if __name__ == "__main__":
    INPUT_DIM = 44
    NUM_LAYERS = 5
    EMB_DIM = 200
    BATCH = 8

    key = jax.random.PRNGKey(0)
    key_params, key_x, key_xg = jax.random.split(key, 3)

    params = init_mlp_params(key_params, input_dim=INPUT_DIM,
                             num_mlp_layers=NUM_LAYERS, emb_dim=EMB_DIM,
                             multi_model=False)
    packed = pack_params(params)
    x = jax.random.normal(key_x, (BATCH, INPUT_DIM), jnp.float32)

    # --- single batch, regression head (module-equivalent path) -------------
    out = jax.block_until_ready(
        mlp_forward(packed, x, emb_dim=EMB_DIM, multi_model=False))
    assert out.shape == (BATCH, 1), out.shape

    ref_bf16 = mlp_forward_ref_bf16(params, x, multi_model=False)
    assert jnp.allclose(out, ref_bf16, atol=2e-2, rtol=2e-2), \
        f"kernel vs bf16 reference: max abs err {jnp.max(jnp.abs(out - ref_bf16))}"

    ref_f32 = mlp_forward_ref(params, x, multi_model=False)
    assert float(jnp.max(jnp.abs(out - ref_f32))) < 0.5, \
        f"kernel vs f32 reference: max abs err {jnp.max(jnp.abs(out - ref_f32))}"

    # --- multi_model=True path (returns the embedding) -----------------------
    params_mm = init_mlp_params(key_params, input_dim=INPUT_DIM,
                                num_mlp_layers=NUM_LAYERS, emb_dim=EMB_DIM,
                                multi_model=True)
    packed_mm = pack_params(params_mm)
    emb = jax.block_until_ready(
        mlp_forward(packed_mm, x, emb_dim=EMB_DIM, multi_model=True))
    assert emb.shape == (BATCH, EMB_DIM), emb.shape
    emb_ref = mlp_forward_ref_bf16(params_mm, x, multi_model=True)
    assert jnp.allclose(emb, emb_ref, atol=5e-2, rtol=2e-2), \
        f"trunk mismatch: max abs err {jnp.max(jnp.abs(emb - emb_ref))}"

    # --- grouped path: grid over independent batches, weights resident -------
    G = 3
    xg = jax.random.normal(key_xg, (G, BATCH, INPUT_DIM), jnp.float32)
    outg = jax.block_until_ready(
        mlp_forward_grouped(packed, xg, emb_dim=EMB_DIM, multi_model=False))
    assert outg.shape == (G, BATCH, 1), outg.shape
    refg = jnp.stack([mlp_forward_ref_bf16(params, xg[i], multi_model=False)
                      for i in range(G)])
    assert jnp.allclose(outg, refg, atol=2e-2, rtol=2e-2), \
        f"grouped mismatch: max abs err {jnp.max(jnp.abs(outg - refg))}"

    print("KERNEL_OK")
</pallas_src>

<mosaic_0001>
module attributes {stable_mosaic.version = 11 : i64} {
  func.func @_mlp_head_kernel(%arg0: i32, %arg1: memref<1x8x256xf32, #tpu.memory_space<vmem>>, %arg2: memref<5x256x256xbf16, #tpu.memory_space<vmem>>, %arg3: memref<5x1x256xf32, #tpu.memory_space<vmem>>, %arg4: memref<5x1x256xf32, #tpu.memory_space<vmem>>, %arg5: memref<1x256xbf16, #tpu.memory_space<vmem>>, %arg6: memref<1x1xf32, #tpu.memory_space<vmem>>, %arg7: memref<1x8x1xf32, #tpu.memory_space<vmem>>) attributes {dimension_semantics = [#tpu.dimension_semantics<parallel>], iteration_bounds = array<i64: 1>, scalar_prefetch = 0 : i64, scratch_operands = 0 : i64, tpu.core_type = #tpu.core_type<tc>, window_params = [{transform_indices = @transform_0, window_bounds = array<i64: 1, 8, 256>}, {pipeline_mode = #tpu.pipeline_mode<synchronous>, transform_indices = @transform_1, window_bounds = array<i64: 5, 256, 256>}, {pipeline_mode = #tpu.pipeline_mode<synchronous>, transform_indices = @transform_2, window_bounds = array<i64: 5, 1, 256>}, {pipeline_mode = #tpu.pipeline_mode<synchronous>, transform_indices = @transform_3, window_bounds = array<i64: 5, 1, 256>}, {pipeline_mode = #tpu.pipeline_mode<synchronous>, transform_indices = @transform_4, window_bounds = array<i64: 1, 256>}, {pipeline_mode = #tpu.pipeline_mode<synchronous>, transform_indices = @transform_5, window_bounds = array<i64: 1, 1>}, {transform_indices = @transform_6, window_bounds = array<i64: 1, 8, 1>}]} {
    %c0 = arith.constant 0 : index
    %c0_0 = arith.constant 0 : index
    %c0_1 = arith.constant 0 : index
    %0 = vector.load %arg1[%c0, %c0_0, %c0_1] : memref<1x8x256xf32, #tpu.memory_space<vmem>>, vector<1x8x256xf32>
    %1 = vector.shape_cast %0 : vector<1x8x256xf32> to vector<8x256xf32>
    %2 = arith.truncf %1 : vector<8x256xf32> to vector<8x256xbf16>
    %c0_2 = arith.constant 0 : index
    %c0_3 = arith.constant 0 : index
    %c0_4 = arith.constant 0 : index
    %3 = vector.load %arg2[%c0_2, %c0_3, %c0_4] : memref<5x256x256xbf16, #tpu.memory_space<vmem>>, vector<1x256x256xbf16>
    %4 = vector.shape_cast %3 : vector<1x256x256xbf16> to vector<256x256xbf16>
    %cst = arith.constant dense<0.000000e+00> : vector<8x256xf32>
    %5 = tpu.matmul %2, %4, %cst {dimension_numbers = #tpu.dot_dimension_numbers<[1], [0], [0], [1], [0, 0, 1, 1], [], []>} : vector<8x256xbf16>, vector<256x256xbf16>, vector<8x256xf32> -> vector<8x256xf32>
    %cst_5 = arith.constant dense<0.000000e+00> : vector<256xf32>
    %6 = vector.multi_reduction <add>, %5, %cst_5 [0] : vector<8x256xf32> to vector<256xf32>
    %7 = vector.shape_cast %6 : vector<256xf32> to vector<1x256xf32>
    %cst_6 = arith.constant 1.250000e-01 : f32
    %8 = vector.broadcast %cst_6 : f32 to vector<1x256xf32>
    %9 = arith.mulf %7, %8 : vector<1x256xf32>
    %10 = arith.mulf %5, %5 : vector<8x256xf32>
    %cst_7 = arith.constant dense<0.000000e+00> : vector<256xf32>
    %11 = vector.multi_reduction <add>, %10, %cst_7 [0] : vector<8x256xf32> to vector<256xf32>
    %12 = vector.shape_cast %11 : vector<256xf32> to vector<1x256xf32>
    %cst_8 = arith.constant 1.250000e-01 : f32
    %13 = vector.broadcast %cst_8 : f32 to vector<1x256xf32>
    %14 = arith.mulf %12, %13 : vector<1x256xf32>
    %15 = arith.mulf %9, %9 : vector<1x256xf32>
    %16 = arith.subf %14, %15 : vector<1x256xf32>
    %cst_9 = arith.constant 0.000000e+00 : f32
    %17 = vector.broadcast %cst_9 : f32 to vector<1x256xf32>
    %18 = arith.maximumf %16, %17 : vector<1x256xf32>
    %c0_10 = arith.constant 0 : index
    %c0_11 = arith.constant 0 : index
    %c0_12 = arith.constant 0 : index
    %19 = vector.load %arg3[%c0_10, %c0_11, %c0_12] : memref<5x1x256xf32, #tpu.memory_space<vmem>>, vector<1x1x256xf32>
    %20 = vector.shape_cast %19 : vector<1x1x256xf32> to vector<1x256xf32>
    %cst_13 = arith.constant 9.99999974E-6 : f32
    %21 = vector.broadcast %cst_13 : f32 to vector<1x256xf32>
    %22 = arith.addf %18, %21 : vector<1x256xf32>
    %23 = math.rsqrt %22 : vector<1x256xf32>
    %24 = arith.mulf %20, %23 : vector<1x256xf32>
    %c0_14 = arith.constant 0 : index
    %c0_15 = arith.constant 0 : index
    %c0_16 = arith.constant 0 : index
    %25 = vector.load %arg4[%c0_14, %c0_15, %c0_16] : memref<5x1x256xf32, #tpu.memory_space<vmem>>, vector<1x1x256xf32>
    %26 = vector.shape_cast %25 : vector<1x1x256xf32> to vector<1x256xf32>
    %27 = arith.mulf %9, %24 : vector<1x256xf32>
    %28 = arith.subf %26, %27 : vector<1x256xf32>
    %29 = vector.broadcast %24 : vector<1x256xf32> to vector<8x256xf32>
    %30 = arith.mulf %5, %29 : vector<8x256xf32>
    %31 = vector.broadcast %28 : vector<1x256xf32> to vector<8x256xf32>
    %32 = arith.addf %30, %31 : vector<8x256xf32>
    %cst_17 = arith.constant 0.000000e+00 : f32
    %33 = vector.broadcast %cst_17 : f32 to vector<8x256xf32>
    %34 = arith.maximumf %32, %33 : vector<8x256xf32>
    %35 = arith.truncf %34 : vector<8x256xf32> to vector<8x256xbf16>
    %c1 = arith.constant 1 : index
    %c0_18 = arith.constant 0 : index
    %c0_19 = arith.constant 0 : index
    %36 = vector.load %arg2[%c1, %c0_18, %c0_19] : memref<5x256x256xbf16, #tpu.memory_space<vmem>>, vector<1x256x256xbf16>
    %37 = vector.shape_cast %36 : vector<1x256x256xbf16> to vector<256x256xbf16>
    %cst_20 = arith.constant dense<0.000000e+00> : vector<8x256xf32>
    %38 = tpu.matmul %35, %37, %cst_20 {dimension_numbers = #tpu.dot_dimension_numbers<[1], [0], [0], [1], [0, 0, 1, 1], [], []>} : vector<8x256xbf16>, vector<256x256xbf16>, vector<8x256xf32> -> vector<8x256xf32>
    %cst_21 = arith.constant dense<0.000000e+00> : vector<256xf32>
    %39 = vector.multi_reduction <add>, %38, %cst_21 [0] : vector<8x256xf32> to vector<256xf32>
    %40 = vector.shape_cast %39 : vector<256xf32> to vector<1x256xf32>
    %cst_22 = arith.constant 1.250000e-01 : f32
    %41 = vector.broadcast %cst_22 : f32 to vector<1x256xf32>
    %42 = arith.mulf %40, %41 : vector<1x256xf32>
    %43 = arith.mulf %38, %38 : vector<8x256xf32>
    %cst_23 = arith.constant dense<0.000000e+00> : vector<256xf32>
    %44 = vector.multi_reduction <add>, %43, %cst_23 [0] : vector<8x256xf32> to vector<256xf32>
    %45 = vector.shape_cast %44 : vector<256xf32> to vector<1x256xf32>
    %cst_24 = arith.constant 1.250000e-01 : f32
    %46 = vector.broadcast %cst_24 : f32 to vector<1x256xf32>
    %47 = arith.mulf %45, %46 : vector<1x256xf32>
    %48 = arith.mulf %42, %42 : vector<1x256xf32>
    %49 = arith.subf %47, %48 : vector<1x256xf32>
    %cst_25 = arith.constant 0.000000e+00 : f32
    %50 = vector.broadcast %cst_25 : f32 to vector<1x256xf32>
    %51 = arith.maximumf %49, %50 : vector<1x256xf32>
    %c1_26 = arith.constant 1 : index
    %c0_27 = arith.constant 0 : index
    %c0_28 = arith.constant 0 : index
    %52 = vector.load %arg3[%c1_26, %c0_27, %c0_28] : memref<5x1x256xf32, #tpu.memory_space<vmem>>, vector<1x1x256xf32>
    %53 = vector.shape_cast %52 : vector<1x1x256xf32> to vector<1x256xf32>
    %cst_29 = arith.constant 9.99999974E-6 : f32
    %54 = vector.broadcast %cst_29 : f32 to vector<1x256xf32>
    %55 = arith.addf %51, %54 : vector<1x256xf32>
    %56 = math.rsqrt %55 : vector<1x256xf32>
    %57 = arith.mulf %53, %56 : vector<1x256xf32>
    %c1_30 = arith.constant 1 : index
    %c0_31 = arith.constant 0 : index
    %c0_32 = arith.constant 0 : index
    %58 = vector.load %arg4[%c1_30, %c0_31, %c0_32] : memref<5x1x256xf32, #tpu.memory_space<vmem>>, vector<1x1x256xf32>
    %59 = vector.shape_cast %58 : vector<1x1x256xf32> to vector<1x256xf32>
    %60 = arith.mulf %42, %57 : vector<1x256xf32>
    %61 = arith.subf %59, %60 : vector<1x256xf32>
    %62 = vector.broadcast %57 : vector<1x256xf32> to vector<8x256xf32>
    %63 = arith.mulf %38, %62 : vector<8x256xf32>
    %64 = vector.broadcast %61 : vector<1x256xf32> to vector<8x256xf32>
    %65 = arith.addf %63, %64 : vector<8x256xf32>
    %cst_33 = arith.constant 0.000000e+00 : f32
    %66 = vector.broadcast %cst_33 : f32 to vector<8x256xf32>
    %67 = arith.maximumf %65, %66 : vector<8x256xf32>
    %68 = arith.truncf %67 : vector<8x256xf32> to vector<8x256xbf16>
    %c2 = arith.constant 2 : index
    %c0_34 = arith.constant 0 : index
    %c0_35 = arith.constant 0 : index
    %69 = vector.load %arg2[%c2, %c0_34, %c0_35] : memref<5x256x256xbf16, #tpu.memory_space<vmem>>, vector<1x256x256xbf16>
    %70 = vector.shape_cast %69 : vector<1x256x256xbf16> to vector<256x256xbf16>
    %cst_36 = arith.constant dense<0.000000e+00> : vector<8x256xf32>
    %71 = tpu.matmul %68, %70, %cst_36 {dimension_numbers = #tpu.dot_dimension_numbers<[1], [0], [0], [1], [0, 0, 1, 1], [], []>} : vector<8x256xbf16>, vector<256x256xbf16>, vector<8x256xf32> -> vector<8x256xf32>
    %cst_37 = arith.constant dense<0.000000e+00> : vector<256xf32>
    %72 = vector.multi_reduction <add>, %71, %cst_37 [0] : vector<8x256xf32> to vector<256xf32>
    %73 = vector.shape_cast %72 : vector<256xf32> to vector<1x256xf32>
    %cst_38 = arith.constant 1.250000e-01 : f32
    %74 = vector.broadcast %cst_38 : f32 to vector<1x256xf32>
    %75 = arith.mulf %73, %74 : vector<1x256xf32>
    %76 = arith.mulf %71, %71 : vector<8x256xf32>
    %cst_39 = arith.constant dense<0.000000e+00> : vector<256xf32>
    %77 = vector.multi_reduction <add>, %76, %cst_39 [0] : vector<8x256xf32> to vector<256xf32>
    %78 = vector.shape_cast %77 : vector<256xf32> to vector<1x256xf32>
    %cst_40 = arith.constant 1.250000e-01 : f32
    %79 = vector.broadcast %cst_40 : f32 to vector<1x256xf32>
    %80 = arith.mulf %78, %79 : vector<1x256xf32>
    %81 = arith.mulf %75, %75 : vector<1x256xf32>
    %82 = arith.subf %80, %81 : vector<1x256xf32>
    %cst_41 = arith.constant 0.000000e+00 : f32
    %83 = vector.broadcast %cst_41 : f32 to vector<1x256xf32>
    %84 = arith.maximumf %82, %83 : vector<1x256xf32>
    %c2_42 = arith.constant 2 : index
    %c0_43 = arith.constant 0 : index
    %c0_44 = arith.constant 0 : index
    %85 = vector.load %arg3[%c2_42, %c0_43, %c0_44] : memref<5x1x256xf32, #tpu.memory_space<vmem>>, vector<1x1x256xf32>
    %86 = vector.shape_cast %85 : vector<1x1x256xf32> to vector<1x256xf32>
    %cst_45 = arith.constant 9.99999974E-6 : f32
    %87 = vector.broadcast %cst_45 : f32 to vector<1x256xf32>
    %88 = arith.addf %84, %87 : vector<1x256xf32>
    %89 = math.rsqrt %88 : vector<1x256xf32>
    %90 = arith.mulf %86, %89 : vector<1x256xf32>
    %c2_46 = arith.constant 2 : index
    %c0_47 = arith.constant 0 : index
    %c0_48 = arith.constant 0 : index
    %91 = vector.load %arg4[%c2_46, %c0_47, %c0_48] : memref<5x1x256xf32, #tpu.memory_space<vmem>>, vector<1x1x256xf32>
    %92 = vector.shape_cast %91 : vector<1x1x256xf32> to vector<1x256xf32>
    %93 = arith.mulf %75, %90 : vector<1x256xf32>
    %94 = arith.subf %92, %93 : vector<1x256xf32>
    %95 = vector.broadcast %90 : vector<1x256xf32> to vector<8x256xf32>
    %96 = arith.mulf %71, %95 : vector<8x256xf32>
    %97 = vector.broadcast %94 : vector<1x256xf32> to vector<8x256xf32>
    %98 = arith.addf %96, %97 : vector<8x256xf32>
    %cst_49 = arith.constant 0.000000e+00 : f32
    %99 = vector.broadcast %cst_49 : f32 to vector<8x256xf32>
    %100 = arith.maximumf %98, %99 : vector<8x256xf32>
    %101 = arith.truncf %100 : vector<8x256xf32> to vector<8x256xbf16>
    %c3 = arith.constant 3 : index
    %c0_50 = arith.constant 0 : index
    %c0_51 = arith.constant 0 : index
    %102 = vector.load %arg2[%c3, %c0_50, %c0_51] : memref<5x256x256xbf16, #tpu.memory_space<vmem>>, vector<1x256x256xbf16>
    %103 = vector.shape_cast %102 : vector<1x256x256xbf16> to vector<256x256xbf16>
    %cst_52 = arith.constant dense<0.000000e+00> : vector<8x256xf32>
    %104 = tpu.matmul %101, %103, %cst_52 {dimension_numbers = #tpu.dot_dimension_numbers<[1], [0], [0], [1], [0, 0, 1, 1], [], []>} : vector<8x256xbf16>, vector<256x256xbf16>, vector<8x256xf32> -> vector<8x256xf32>
    %cst_53 = arith.constant dense<0.000000e+00> : vector<256xf32>
    %105 = vector.multi_reduction <add>, %104, %cst_53 [0] : vector<8x256xf32> to vector<256xf32>
    %106 = vector.shape_cast %105 : vector<256xf32> to vector<1x256xf32>
    %cst_54 = arith.constant 1.250000e-01 : f32
    %107 = vector.broadcast %cst_54 : f32 to vector<1x256xf32>
    %108 = arith.mulf %106, %107 : vector<1x256xf32>
    %109 = arith.mulf %104, %104 : vector<8x256xf32>
    %cst_55 = arith.constant dense<0.000000e+00> : vector<256xf32>
    %110 = vector.multi_reduction <add>, %109, %cst_55 [0] : vector<8x256xf32> to vector<256xf32>
    %111 = vector.shape_cast %110 : vector<256xf32> to vector<1x256xf32>
    %cst_56 = arith.constant 1.250000e-01 : f32
    %112 = vector.broadcast %cst_56 : f32 to vector<1x256xf32>
    %113 = arith.mulf %111, %112 : vector<1x256xf32>
    %114 = arith.mulf %108, %108 : vector<1x256xf32>
    %115 = arith.subf %113, %114 : vector<1x256xf32>
    %cst_57 = arith.constant 0.000000e+00 : f32
    %116 = vector.broadcast %cst_57 : f32 to vector<1x256xf32>
    %117 = arith.maximumf %115, %116 : vector<1x256xf32>
    %c3_58 = arith.constant 3 : index
    %c0_59 = arith.constant 0 : index
    %c0_60 = arith.constant 0 : index
    %118 = vector.load %arg3[%c3_58, %c0_59, %c0_60] : memref<5x1x256xf32, #tpu.memory_space<vmem>>, vector<1x1x256xf32>
    %119 = vector.shape_cast %118 : vector<1x1x256xf32> to vector<1x256xf32>
    %cst_61 = arith.constant 9.99999974E-6 : f32
    %120 = vector.broadcast %cst_61 : f32 to vector<1x256xf32>
    %121 = arith.addf %117, %120 : vector<1x256xf32>
    %122 = math.rsqrt %121 : vector<1x256xf32>
    %123 = arith.mulf %119, %122 : vector<1x256xf32>
    %c3_62 = arith.constant 3 : index
    %c0_63 = arith.constant 0 : index
    %c0_64 = arith.constant 0 : index
    %124 = vector.load %arg4[%c3_62, %c0_63, %c0_64] : memref<5x1x256xf32, #tpu.memory_space<vmem>>, vector<1x1x256xf32>
    %125 = vector.shape_cast %124 : vector<1x1x256xf32> to vector<1x256xf32>
    %126 = arith.mulf %108, %123 : vector<1x256xf32>
    %127 = arith.subf %125, %126 : vector<1x256xf32>
    %128 = vector.broadcast %123 : vector<1x256xf32> to vector<8x256xf32>
    %129 = arith.mulf %104, %128 : vector<8x256xf32>
    %130 = vector.broadcast %127 : vector<1x256xf32> to vector<8x256xf32>
    %131 = arith.addf %129, %130 : vector<8x256xf32>
    %cst_65 = arith.constant 0.000000e+00 : f32
    %132 = vector.broadcast %cst_65 : f32 to vector<8x256xf32>
    %133 = arith.maximumf %131, %132 : vector<8x256xf32>
    %134 = arith.truncf %133 : vector<8x256xf32> to vector<8x256xbf16>
    %c4 = arith.constant 4 : index
    %c0_66 = arith.constant 0 : index
    %c0_67 = arith.constant 0 : index
    %135 = vector.load %arg2[%c4, %c0_66, %c0_67] : memref<5x256x256xbf16, #tpu.memory_space<vmem>>, vector<1x256x256xbf16>
    %136 = vector.shape_cast %135 : vector<1x256x256xbf16> to vector<256x256xbf16>
    %cst_68 = arith.constant dense<0.000000e+00> : vector<8x256xf32>
    %137 = tpu.matmul %134, %136, %cst_68 {dimension_numbers = #tpu.dot_dimension_numbers<[1], [0], [0], [1], [0, 0, 1, 1], [], []>} : vector<8x256xbf16>, vector<256x256xbf16>, vector<8x256xf32> -> vector<8x256xf32>
    %cst_69 = arith.constant dense<0.000000e+00> : vector<256xf32>
    %138 = vector.multi_reduction <add>, %137, %cst_69 [0] : vector<8x256xf32> to vector<256xf32>
    %139 = vector.shape_cast %138 : vector<256xf32> to vector<1x256xf32>
    %cst_70 = arith.constant 1.250000e-01 : f32
    %140 = vector.broadcast %cst_70 : f32 to vector<1x256xf32>
    %141 = arith.mulf %139, %140 : vector<1x256xf32>
    %142 = arith.mulf %137, %137 : vector<8x256xf32>
    %cst_71 = arith.constant dense<0.000000e+00> : vector<256xf32>
    %143 = vector.multi_reduction <add>, %142, %cst_71 [0] : vector<8x256xf32> to vector<256xf32>
    %144 = vector.shape_cast %143 : vector<256xf32> to vector<1x256xf32>
    %cst_72 = arith.constant 1.250000e-01 : f32
    %145 = vector.broadcast %cst_72 : f32 to vector<1x256xf32>
    %146 = arith.mulf %144, %145 : vector<1x256xf32>
    %147 = arith.mulf %141, %141 : vector<1x256xf32>
    %148 = arith.subf %146, %147 : vector<1x256xf32>
    %cst_73 = arith.constant 0.000000e+00 : f32
    %149 = vector.broadcast %cst_73 : f32 to vector<1x256xf32>
    %150 = arith.maximumf %148, %149 : vector<1x256xf32>
    %c4_74 = arith.constant 4 : index
    %c0_75 = arith.constant 0 : index
    %c0_76 = arith.constant 0 : index
    %151 = vector.load %arg3[%c4_74, %c0_75, %c0_76] : memref<5x1x256xf32, #tpu.memory_space<vmem>>, vector<1x1x256xf32>
    %152 = vector.shape_cast %151 : vector<1x1x256xf32> to vector<1x256xf32>
    %cst_77 = arith.constant 9.99999974E-6 : f32
    %153 = vector.broadcast %cst_77 : f32 to vector<1x256xf32>
    %154 = arith.addf %150, %153 : vector<1x256xf32>
    %155 = math.rsqrt %154 : vector<1x256xf32>
    %156 = arith.mulf %152, %155 : vector<1x256xf32>
    %c4_78 = arith.constant 4 : index
    %c0_79 = arith.constant 0 : index
    %c0_80 = arith.constant 0 : index
    %157 = vector.load %arg4[%c4_78, %c0_79, %c0_80] : memref<5x1x256xf32, #tpu.memory_space<vmem>>, vector<1x1x256xf32>
    %158 = vector.shape_cast %157 : vector<1x1x256xf32> to vector<1x256xf32>
    %159 = arith.mulf %141, %156 : vector<1x256xf32>
    %160 = arith.subf %158, %159 : vector<1x256xf32>
    %161 = vector.broadcast %156 : vector<1x256xf32> to vector<8x256xf32>
    %162 = arith.mulf %137, %161 : vector<8x256xf32>
    %163 = vector.broadcast %160 : vector<1x256xf32> to vector<8x256xf32>
    %164 = arith.addf %162, %163 : vector<8x256xf32>
    %cst_81 = arith.constant 0.000000e+00 : f32
    %165 = vector.broadcast %cst_81 : f32 to vector<8x256xf32>
    %166 = arith.maximumf %164, %165 : vector<8x256xf32>
    %c0_82 = arith.constant 0 : index
    %c0_83 = arith.constant 0 : index
    %167 = vector.load %arg5[%c0_82, %c0_83] : memref<1x256xbf16, #tpu.memory_space<vmem>>, vector<1x256xbf16>
    %168 = arith.extf %167 : vector<1x256xbf16> to vector<1x256xf32>
    %169 = vector.broadcast %168 : vector<1x256xf32> to vector<8x256xf32>
    %170 = arith.mulf %166, %169 : vector<8x256xf32>
    %cst_84 = arith.constant dense<0.000000e+00> : vector<8xf32>
    %171 = vector.multi_reduction <add>, %170, %cst_84 [1] : vector<8x256xf32> to vector<8xf32>
    %172 = vector.shape_cast %171 : vector<8xf32> to vector<8x1xf32>
    %c0_85 = arith.constant 0 : index
    %c0_86 = arith.constant 0 : index
    %173 = vector.load %arg6[%c0_85, %c0_86] : memref<1x1xf32, #tpu.memory_space<vmem>>, vector<1x1xf32>
    %174 = vector.broadcast %173 : vector<1x1xf32> to vector<8x1xf32>
    %175 = arith.addf %172, %174 : vector<8x1xf32>
    %cst_87 = arith.constant 0.000000e+00 : f32
    %cst_88 = arith.constant 5.000000e+01 : f32
    %176 = vector.broadcast %cst_87 : f32 to vector<8x1xf32>
    %177 = arith.maximumf %176, %175 : vector<8x1xf32>
    %178 = vector.broadcast %cst_88 : f32 to vector<8x1xf32>
    %179 = arith.minimumf %178, %177 : vector<8x1xf32>
    %c0_89 = arith.constant 0 : index
    %c0_90 = arith.constant 0 : index
    %c0_91 = arith.constant 0 : index
    %180 = vector.load %arg7[%c0_89, %c0_90, %c0_91] : memref<1x8x1xf32, #tpu.memory_space<vmem>>, vector<1x8x1xf32>
    %181 = vector.shape_cast %180 : vector<1x8x1xf32> to vector<8x1xf32>
    %182 = vector.shape_cast %179 : vector<8x1xf32> to vector<1x8x1xf32>
    tpu.vector_store %arg7[%c0_89, %c0_90, %c0_91], %182 {strides = array<i32>} : memref<1x8x1xf32, #tpu.memory_space<vmem>>, vector<1x8x1xf32>,
    return
  }
  func.func @transform_0(%arg0: i32) -> (i32, i32, i32) {
    %c0_i32 = arith.constant 0 : i32
    %c0_i32_0 = arith.constant 0 : i32
    %c0_i32_1 = arith.constant 0 : i32
    return %arg0, %c0_i32, %c0_i32_0 : i32, i32, i32
  }
  func.func @transform_1(%arg0: i32) -> (i32, i32, i32) {
    %c0_i32 = arith.constant 0 : i32
    %c0_i32_0 = arith.constant 0 : i32
    %c0_i32_1 = arith.constant 0 : i32
    %c0_i32_2 = arith.constant 0 : i32
    return %c0_i32, %c0_i32_0, %c0_i32_1 : i32, i32, i32
  }
  func.func @transform_2(%arg0: i32) -> (i32, i32, i32) {
    %c0_i32 = arith.constant 0 : i32
    %c0_i32_0 = arith.constant 0 : i32
    %c0_i32_1 = arith.constant 0 : i32
    %c0_i32_2 = arith.constant 0 : i32
    return %c0_i32, %c0_i32_0, %c0_i32_1 : i32, i32, i32
  }
  func.func @transform_3(%arg0: i32) -> (i32, i32, i32) {
    %c0_i32 = arith.constant 0 : i32
    %c0_i32_0 = arith.constant 0 : i32
    %c0_i32_1 = arith.constant 0 : i32
    %c0_i32_2 = arith.constant 0 : i32
    return %c0_i32, %c0_i32_0, %c0_i32_1 : i32, i32, i32
  }
  func.func @transform_4(%arg0: i32) -> (i32, i32) {
    %c0_i32 = arith.constant 0 : i32
    %c0_i32_0 = arith.constant 0 : i32
    %c0_i32_1 = arith.constant 0 : i32
    return %c0_i32, %c0_i32_0 : i32, i32
  }
  func.func @transform_5(%arg0: i32) -> (i32, i32) {
    %c0_i32 = arith.constant 0 : i32
    %c0_i32_0 = arith.constant 0 : i32
    %c0_i32_1 = arith.constant 0 : i32
    return %c0_i32, %c0_i32_0 : i32, i32
  }
  func.func @transform_6(%arg0: i32) -> (i32, i32, i32) {
    %c0_i32 = arith.constant 0 : i32
    %c0_i32_0 = arith.constant 0 : i32
    %c0_i32_1 = arith.constant 0 : i32
    return %arg0, %c0_i32, %c0_i32_0 : i32, i32, i32
  }
}

</mosaic_0001>

<llo_original>
// kernel: mlp_forward_grouped.1
$region0: #{mlp_forward_grouped.1}
  #allocation0 [shape = 'u32[]', space=smem, size = 0x4, offset = 0x4, fixed_abs, tag = 'smem constant byte address 0x4 - core index']
  #allocation1 [shape = 'u32[72,128]{1,0:T(1,128)}', space=vmem, size = 0x9000, scoped, tag = 'internal scratch']
  #allocation2 [shape = 'f32[1,1]{1,0:T(1,128)S(1)}', space=vmem, size = 0x200, scoped, tag = 'scoped memory for mlp_forward_grouped.1']
  %s0 = inlined_call_operand.vmem [shape: f32[1,8,256], index: 0, kind: input, shape index: {}]
  %s1 = inlined_call_operand.hbm [shape: bf16[5,256,256], index: 1, kind: input, shape index: {}]
  %s2 = inlined_call_operand.vmem [shape: f32[5,1,256], index: 2, kind: input, shape index: {}]
  %s3 = inlined_call_operand.vmem [shape: f32[5,1,256], index: 3, kind: input, shape index: {}]
  %s4 = inlined_call_operand.vmem [shape: bf16[1,256], index: 4, kind: input, shape index: {}]
  %s5 = inlined_call_operand.<no memory space> [shape: f32[1,1], index: 5, kind: input, shape index: {}]
  %s6 = inlined_call_operand.vmem [shape: f32[1,8,1], index: 6, kind: output, shape index: {}]
  %s7 = sld [smem:[#allocation0]]
  $region38: #{mlp_forward_grouped.1} parent=0
    _
  %s9 = ssub.s32 1, %s7
  %s10 = scalar_select 0, %s9, %s7
  %v11 = vstv %s5
  %12 = vst [vmem:[#allocation2] sm:$0x1] %v11
  $region1: #{mlp_forward_grouped.1} parent=0
    #allocation3 [shape = 'u8[655360]{0}', space=vmem, size = 0xa0000, scoped, tag = 'input window, operand 1, single buffered']
    #allocation4 [shape = 's32[1]{0}', space=sflag, size = 0x4, scoped, tag = 'scoped memory for mlp_forward_grouped.1']
    %13 = vsyncpa [#allocation4], 0
    // Predicated region
    $region2: #{mlp_forward_grouped.1} parent=1 // pred_check
      _
    $region3: #{mlp_forward_grouped.1} parent=1 // pred_check_branch
      %15 = sbr.rel (0) target = $region5
    $region4: #{mlp_forward_grouped.1} parent=1 // pred_region
      _
    $region5: #{mlp_forward_grouped.1} parent=1 // pred_fallthru
      _
    // Predicated region
    $region6: #{mlp_forward_grouped.1} parent=1 // pred_check
      _
    $region7: #{mlp_forward_grouped.1} parent=1 // pred_check_branch
      %17 = sbr.rel (0) target = $region9
    $region8: #{mlp_forward_grouped.1} parent=1 // pred_region
      %19 = vsyncadd [#allocation4], 0
      %s20 = sshll.u32 %s1, 4
      %s21 = int_to_ptr.hbm [resolvable:$true] %s20
      %s22 = sshll.u32 [#allocation3], 4
      %s23 = int_to_ptr.vmem [resolvable:$true] %s22
      %28 = dma.hbm_to_vmem [thread:$0]  %s21, 20480, %s23, [#allocation4], 128, 128, 8
    $region9: #{mlp_forward_grouped.1} parent=1 // pred_fallthru
      _
    // Predicated region
    $region10: #{mlp_forward_grouped.1} parent=1 // pred_check
      _
    $region11: #{mlp_forward_grouped.1} parent=1 // pred_check_branch
      %30 = sbr.rel (0) target = $region13
    $region12: #{mlp_forward_grouped.1} parent=1 // pred_region
      _
    $region13: #{mlp_forward_grouped.1} parent=1 // pred_fallthru
      _
    // Predicated region
    $region14: #{mlp_forward_grouped.1} parent=1 // pred_check
      _
    $region15: #{mlp_forward_grouped.1} parent=1 // pred_check_branch
      %32 = sbr.rel (0) target = $region17
    $region16: #{mlp_forward_grouped.1} parent=1 // pred_region
      _
    $region17: #{mlp_forward_grouped.1} parent=1 // pred_fallthru
      _
    // Predicated region
    $region18: #{mlp_forward_grouped.1} parent=1 // pred_check
      _
    $region19: #{mlp_forward_grouped.1} parent=1 // pred_check_branch
      %34 = sbr.rel (0) target = $region21
    $region20: #{mlp_forward_grouped.1} parent=1 // pred_region
      _
    $region21: #{mlp_forward_grouped.1} parent=1 // pred_fallthru
      _
    // Predicated region
    $region22: #{mlp_forward_grouped.1} parent=1 // pred_check
      _
    $region23: #{mlp_forward_grouped.1} parent=1 // pred_check_branch
      %36 = sbr.rel (0) target = $region25
    $region24: #{mlp_forward_grouped.1} parent=1 // pred_region
      _
    $region25: #{mlp_forward_grouped.1} parent=1 // pred_fallthru
      _
    // Predicated region
    $region26: #{mlp_forward_grouped.1} parent=1 // pred_check
      _
    $region27: #{mlp_forward_grouped.1} parent=1 // pred_check_branch
      %38 = sbr.rel (0) target = $region29
    $region28: #{mlp_forward_grouped.1} parent=1 // pred_region
      %40 = dma.done [#allocation4], 20480
    $region29: #{mlp_forward_grouped.1} parent=1 // pred_fallthru
      _
    %v41 = vld [vmem:[%s0] sm:$0xff]
    %v42 = vld [vmem:[%s0 + $0x8] sm:$0xff]
    %v43 = vpack.c.bf16 %v41, %v41
    %v44 = vpack.c.bf16 %v42, %v42
    %v45 = vld [vmem:[#allocation3] sm:$0xff]
    %v46 = vld [vmem:[#allocation3 + $0x8] sm:$0xff]
    %v47 = vld [vmem:[#allocation3 + $0x10] sm:$0xff]
    %v48 = vld [vmem:[#allocation3 + $0x18] sm:$0xff]
    %v49 = vld [vmem:[#allocation3 + $0x20] sm:$0xff]
    %v50 = vld [vmem:[#allocation3 + $0x28] sm:$0xff]
    %v51 = vld [vmem:[#allocation3 + $0x30] sm:$0xff]
    %v52 = vld [vmem:[#allocation3 + $0x38] sm:$0xff]
    %v53 = vld [vmem:[#allocation3 + $0x40] sm:$0xff]
    %v54 = vld [vmem:[#allocation3 + $0x48] sm:$0xff]
    %v55 = vld [vmem:[#allocation3 + $0x50] sm:$0xff]
    %v56 = vld [vmem:[#allocation3 + $0x58] sm:$0xff]
    %v57 = vld [vmem:[#allocation3 + $0x60] sm:$0xff]
    %v58 = vld [vmem:[#allocation3 + $0x68] sm:$0xff]
    %v59 = vld [vmem:[#allocation3 + $0x70] sm:$0xff]
    %v60 = vld [vmem:[#allocation3 + $0x78] sm:$0xff]
    %v61 = vld [vmem:[#allocation3 + $0x80] sm:$0xff]
    %v62 = vld [vmem:[#allocation3 + $0x88] sm:$0xff]
    %v63 = vld [vmem:[#allocation3 + $0x90] sm:$0xff]
    %v64 = vld [vmem:[#allocation3 + $0x98] sm:$0xff]
    %v65 = vld [vmem:[#allocation3 + $0xa0] sm:$0xff]
    %v66 = vld [vmem:[#allocation3 + $0xa8] sm:$0xff]
    %v67 = vld [vmem:[#allocation3 + $0xb0] sm:$0xff]
    %v68 = vld [vmem:[#allocation3 + $0xb8] sm:$0xff]
    %v69 = vld [vmem:[#allocation3 + $0xc0] sm:$0xff]
    %v70 = vld [vmem:[#allocation3 + $0xc8] sm:$0xff]
    %v71 = vld [vmem:[#allocation3 + $0xd0] sm:$0xff]
    %v72 = vld [vmem:[#allocation3 + $0xd8] sm:$0xff]
    %v73 = vld [vmem:[#allocation3 + $0xe0] sm:$0xff]
    %v74 = vld [vmem:[#allocation3 + $0xe8] sm:$0xff]
    %v75 = vld [vmem:[#allocation3 + $0xf0] sm:$0xff]
    %v76 = vld [vmem:[#allocation3 + $0xf8] sm:$0xff]
    %v109 = vunpack.c.l.b16 %v45
    %v110 = vunpack.c.h.b16 %v45
    %v111 = vunpack.c.l.b16 %v46
    %v112 = vunpack.c.h.b16 %v46
    %v113 = vunpack.c.l.b16 %v47
    %v114 = vunpack.c.h.b16 %v47
    %v115 = vunpack.c.l.b16 %v48
    %v116 = vunpack.c.h.b16 %v48
    %v117 = vunpack.c.l.b16 %v49
    %v118 = vunpack.c.h.b16 %v49
    %v119 = vunpack.c.l.b16 %v50
    %v120 = vunpack.c.h.b16 %v50
    %v121 = vunpack.c.l.b16 %v51
    %v122 = vunpack.c.h.b16 %v51
    %v123 = vunpack.c.l.b16 %v52
    %v124 = vunpack.c.h.b16 %v52
    %v125 = vunpack.c.l.b16 %v53
    %v126 = vunpack.c.h.b16 %v53
    %v127 = vunpack.c.l.b16 %v54
    %v128 = vunpack.c.h.b16 %v54
    %v129 = vunpack.c.l.b16 %v55
    %v130 = vunpack.c.h.b16 %v55
    %v131 = vunpack.c.l.b16 %v56
    %v132 = vunpack.c.h.b16 %v56
    %v133 = vunpack.c.l.b16 %v57
    %v134 = vunpack.c.h.b16 %v57
    %v135 = vunpack.c.l.b16 %v58
    %v136 = vunpack.c.h.b16 %v58
    %v137 = vunpack.c.l.b16 %v59
    %v138 = vunpack.c.h.b16 %v59
    %v139 = vunpack.c.l.b16 %v60
    %v140 = vunpack.c.h.b16 %v60
    %v141 = vunpack.c.l.b16 %v61
    %v142 = vunpack.c.h.b16 %v61
    %v143 = vunpack.c.l.b16 %v62
    %v144 = vunpack.c.h.b16 %v62
    %v145 = vunpack.c.l.b16 %v63
    %v146 = vunpack.c.h.b16 %v63
    %v147 = vunpack.c.l.b16 %v64
    %v148 = vunpack.c.h.b16 %v64
    %v149 = vunpack.c.l.b16 %v65
    %v150 = vunpack.c.h.b16 %v65
    %v151 = vunpack.c.l.b16 %v66
    %v152 = vunpack.c.h.b16 %v66
    %v153 = vunpack.c.l.b16 %v67
    %v154 = vunpack.c.h.b16 %v67
    %v155 = vunpack.c.l.b16 %v68
    %v156 = vunpack.c.h.b16 %v68
    %v157 = vunpack.c.l.b16 %v69
    %v158 = vunpack.c.h.b16 %v69
    %v159 = vunpack.c.l.b16 %v70
    %v160 = vunpack.c.h.b16 %v70
    %v161 = vunpack.c.l.b16 %v71
    %v162 = vunpack.c.h.b16 %v71
    %v163 = vunpack.c.l.b16 %v72
    %v164 = vunpack.c.h.b16 %v72
    %v165 = vunpack.c.l.b16 %v73
    %v166 = vunpack.c.h.b16 %v73
    %v167 = vunpack.c.l.b16 %v74
    %v168 = vunpack.c.h.b16 %v74
    %v169 = vunpack.c.l.b16 %v75
    %v170 = vunpack.c.h.b16 %v75
    %v171 = vunpack.c.l.b16 %v76
    %v172 = vunpack.c.h.b16 %v76
    %v173 = vpack.c.b16 %v111, %v109
    %v174 = vpack.c.b16 %v112, %v110
    %v175 = vpack.c.b16 %v115, %v113
    %v176 = vpack.c.b16 %v116, %v114
    %v177 = vpack.c.b16 %v119, %v117
    %v178 = vpack.c.b16 %v120, %v118
    %v179 = vpack.c.b16 %v123, %v121
    %v180 = vpack.c.b16 %v124, %v122
    %v181 = vpack.c.b16 %v127, %v125
    %v182 = vpack.c.b16 %v128, %v126
    %v183 = vpack.c.b16 %v131, %v129
    %v184 = vpack.c.b16 %v132, %v130
    %v185 = vpack.c.b16 %v135, %v133
    %v186 = vpack.c.b16 %v136, %v134
    %v187 = vpack.c.b16 %v139, %v137
    %v188 = vpack.c.b16 %v140, %v138
    %v189 = vpack.c.b16 %v143, %v141
    %v190 = vpack.c.b16 %v144, %v142
    %v191 = vpack.c.b16 %v147, %v145
    %v192 = vpack.c.b16 %v148, %v146
    %v193 = vpack.c.b16 %v151, %v149
    %v194 = vpack.c.b16 %v152, %v150
    %v195 = vpack.c.b16 %v155, %v153
    %v196 = vpack.c.b16 %v156, %v154
    %v197 = vpack.c.b16 %v159, %v157
    %v198 = vpack.c.b16 %v160, %v158
    %v199 = vpack.c.b16 %v163, %v161
    %v200 = vpack.c.b16 %v164, %v162
    %v201 = vpack.c.b16 %v167, %v165
    %v202 = vpack.c.b16 %v168, %v166
    %v203 = vpack.c.b16 %v171, %v169
    %v204 = vpack.c.b16 %v172, %v170
    %237 = vmatpush.bf16.msra.mxu0 %v187
    %238 = vmatpush.bf16.msra.mxu0 %v185
    %239 = vmatpush.bf16.msra.mxu0 %v183
    %240 = vmatpush.bf16.msra.mxu0 %v181
    %241 = vmatpush.bf16.msra.mxu0 %v179
    %242 = vmatpush.bf16.msra.mxu0 %v177
    %243 = vmatpush.bf16.msra.mxu0 %v175
    %244 = vmatpush.bf16.msra.mxu0 %v173
    %245 = vmatmul.bf16.gmra.mxu0 %v43
    %v246 = vpop.f32.mrf.mxu0
    %v247 = vadd.f32 0.0, %v246
    %v248 = vpop.f32.mrf.mxu0
    %249 = vdwg.mxu0
    %250 = vmatpush.bf16.msra.mxu0 %v203
    %251 = vmatpush.bf16.msra.mxu0 %v201
    %252 = vmatpush.bf16.msra.mxu0 %v199
    %253 = vmatpush.bf16.msra.mxu0 %v197
    %254 = vmatpush.bf16.msra.mxu0 %v195
    %255 = vmatpush.bf16.msra.mxu0 %v193
    %256 = vmatpush.bf16.msra.mxu0 %v191
    %257 = vmatpush.bf16.msra.mxu0 %v189
    %258 = vmatmul.bf16.gmra.mxu0 %v44
    %v259 = vpop.f32.mrf.mxu0
    %v260 = vadd.f32 %v247, %v259
    %v261 = vpop.f32.mrf.mxu0
    %262 = vdwg.mxu0
    %263 = vmatpush.bf16.msra.mxu0 %v188
    %264 = vmatpush.bf16.msra.mxu0 %v186
    %265 = vmatpush.bf16.msra.mxu0 %v184
    %266 = vmatpush.bf16.msra.mxu0 %v182
    %267 = vmatpush.bf16.msra.mxu0 %v180
    %268 = vmatpush.bf16.msra.mxu0 %v178
    %269 = vmatpush.bf16.msra.mxu0 %v176
    %270 = vmatpush.bf16.msra.mxu0 %v174
    %271 = vmatmul.bf16.gmra.mxu0 %v43
    %v272 = vpop.f32.mrf.mxu0
    %v273 = vadd.f32 0.0, %v272
    %v274 = vpop.f32.mrf.mxu0
    %275 = vdwg.mxu0
    %276 = vmatpush.bf16.msra.mxu0 %v204
    %277 = vmatpush.bf16.msra.mxu0 %v202
    %278 = vmatpush.bf16.msra.mxu0 %v200
    %279 = vmatpush.bf16.msra.mxu0 %v198
    %280 = vmatpush.bf16.msra.mxu0 %v196
    %281 = vmatpush.bf16.msra.mxu0 %v194
    %282 = vmatpush.bf16.msra.mxu0 %v192
    %283 = vmatpush.bf16.msra.mxu0 %v190
    %284 = vmatmul.bf16.gmra.mxu0 %v44
    %v285 = vpop.f32.mrf.mxu0
    %v286 = vadd.f32 %v273, %v285
    %v287 = vpop.f32.mrf.mxu0
    %288 = vdwg.mxu0
    %v289 = vrot.slane %v260, 4
    %v290 = vadd.f32 %v260, %v289
    %v291 = vrot.slane %v290, 2
    %v292 = vadd.f32 %v290, %v291
    %v293 = vrot.slane %v292, 1
    %v294 = vadd.f32 %v292, %v293
    %v295 = vrot.slane %v286, 4
    %v296 = vadd.f32 %v286, %v295
    %v297 = vrot.slane %v296, 2
    %v298 = vadd.f32 %v296, %v297
    %v299 = vrot.slane %v298, 1
    %v300 = vadd.f32 %v298, %v299
    %v301 = vmul.f32 %v294, 0.125
    %v302 = vmul.f32 %v300, 0.125
    %v303 = vmul.f32 %v260, %v260
    %v304 = vmul.f32 %v286, %v286
    %v305 = vrot.slane %v303, 4
    %v306 = vadd.f32 %v303, %v305
    %v307 = vrot.slane %v306, 2
    %v308 = vadd.f32 %v306, %v307
    %v309 = vrot.slane %v308, 1
    %v310 = vadd.f32 %v308, %v309
    %v311 = vrot.slane %v304, 4
    %v312 = vadd.f32 %v304, %v311
    %v313 = vrot.slane %v312, 2
    %v314 = vadd.f32 %v312, %v313
    %v315 = vrot.slane %v314, 1
    %v316 = vadd.f32 %v314, %v315
    %v317 = vmul.f32 %v310, 0.125
    %v318 = vmul.f32 %v316, 0.125
    %v319 = vmul.f32 %v301, %v301
    %v320 = vmul.f32 %v302, %v302
    %v321 = vsub.f32 %v317, %v319
    %v322 = vsub.f32 %v318, %v320
    %v323 = vmax.f32 %v321, 0.0
    %v324 = vmax.f32 %v322, 0.0
    %v325 = vld [vmem:[%s2] sm:$0x3]
    %v326 = vadd.f32 %v323, 1e-05
    %v327 = vadd.f32 %v324, 1e-05
    %v328 = vrsqrt.pop %v326
    %v329 = vmul.f32 %v328, %v326
    %v330 = vmul.f32 %v329, %v328
    %v331 = vmul.f32 0.5, %v330
    %v332 = vsub.f32 1.5, %v331
    %v333 = vmul.f32 %v328, %v332
    %vm334 = vweird.f32 %v326
    %vm335 = vweird.f32 %v328
    %vm336 = vmor %vm334, %vm335
    %v337 = vsel %vm336, %v328, %v333
    %v338 = vrsqrt.pop %v327
    %v339 = vmul.f32 %v338, %v327
    %v340 = vmul.f32 %v339, %v338
    %v341 = vmul.f32 0.5, %v340
    %v342 = vsub.f32 1.5, %v341
    %v343 = vmul.f32 %v338, %v342
    %vm344 = vweird.f32 %v327
    %vm345 = vweird.f32 %v338
    %vm346 = vmor %vm344, %vm345
    %v347 = vsel %vm346, %v338, %v343
    %v350 = vrot.slane %v347, 7
    %vm351 = vcmask 1040384
    %v352 = vsel %vm351, %v337, %v350
    %v354 = vmul.f32 %v325, %v352
    %v355 = vld [vmem:[%s3] sm:$0x3]
    %v357 = vperm.slane %v354, 0
    %v358 = vperm.slane %v354, 1
    %v361 = vmul.f32 %v301, %v357
    %v362 = vmul.f32 %v302, %v358
    %v365 = vrot.slane %v362, 7
    %v366 = vsel %vm351, %v361, %v365
    %v368 = vsub.f32 %v355, %v366
    %v369 = vmul.f32 %v260, %v357
    %v370 = vmul.f32 %v286, %v358
    %v372 = vperm.slane %v368, 0
    %v373 = vperm.slane %v368, 1
    %v376 = vadd.f32 %v369, %v372
    %v377 = vadd.f32 %v370, %v373
    %v378 = vmax.f32 %v376, 0.0
    %v379 = vmax.f32 %v377, 0.0
    %v380 = vpack.c.bf16 %v378, %v378
    %v381 = vpack.c.bf16 %v379, %v379
    %s382 = scalar_lea.vmem [#allocation3], 256
    %v383 = vld [vmem:[%s382] sm:$0xff]
    %v384 = vld [vmem:[%s382 + $0x8] sm:$0xff]
    %v385 = vld [vmem:[%s382 + $0x10] sm:$0xff]
    %v386 = vld [vmem:[%s382 + $0x18] sm:$0xff]
    %v387 = vld [vmem:[%s382 + $0x20] sm:$0xff]
    %v388 = vld [vmem:[%s382 + $0x28] sm:$0xff]
    %v389 = vld [vmem:[%s382 + $0x30] sm:$0xff]
    %v390 = vld [vmem:[%s382 + $0x38] sm:$0xff]
    %v391 = vld [vmem:[%s382 + $0x40] sm:$0xff]
    %v392 = vld [vmem:[%s382 + $0x48] sm:$0xff]
    %v393 = vld [vmem:[%s382 + $0x50] sm:$0xff]
    %v394 = vld [vmem:[%s382 + $0x58] sm:$0xff]
    %v395 = vld [vmem:[%s382 + $0x60] sm:$0xff]
    %v396 = vld [vmem:[%s382 + $0x68] sm:$0xff]
    %v397 = vld [vmem:[%s382 + $0x70] sm:$0xff]
    %v398 = vld [vmem:[%s382 + $0x78] sm:$0xff]
    %v399 = vld [vmem:[%s382 + $0x80] sm:$0xff]
    %v400 = vld [vmem:[%s382 + $0x88] sm:$0xff]
    %v401 = vld [vmem:[%s382 + $0x90] sm:$0xff]
    %v402 = vld [vmem:[%s382 + $0x98] sm:$0xff]
    %v403 = vld [vmem:[%s382 + $0xa0] sm:$0xff]
    %v404 = vld [vmem:[%s382 + $0xa8] sm:$0xff]
    %v405 = vld [vmem:[%s382 + $0xb0] sm:$0xff]
    %v406 = vld [vmem:[%s382 + $0xb8] sm:$0xff]
    %v407 = vld [vmem:[%s382 + $0xc0] sm:$0xff]
    %v408 = vld [vmem:[%s382 + $0xc8] sm:$0xff]
    %v409 = vld [vmem:[%s382 + $0xd0] sm:$0xff]
    %v410 = vld [vmem:[%s382 + $0xd8] sm:$0xff]
    %v411 = vld [vmem:[%s382 + $0xe0] sm:$0xff]
    %v412 = vld [vmem:[%s382 + $0xe8] sm:$0xff]
    %v413 = vld [vmem:[%s382 + $0xf0] sm:$0xff]
    %v414 = vld [vmem:[%s382 + $0xf8] sm:$0xff]
    %v447 = vunpack.c.l.b16 %v383
    %v448 = vunpack.c.h.b16 %v383
    %v449 = vunpack.c.l.b16 %v384
    %v450 = vunpack.c.h.b16 %v384
    %v451 = vunpack.c.l.b16 %v385
    %v452 = vunpack.c.h.b16 %v385
    %v453 = vunpack.c.l.b16 %v386
    %v454 = vunpack.c.h.b16 %v386
    %v455 = vunpack.c.l.b16 %v387
    %v456 = vunpack.c.h.b16 %v387
    %v457 = vunpack.c.l.b16 %v388
    %v458 = vunpack.c.h.b16 %v388
    %v459 = vunpack.c.l.b16 %v389
    %v460 = vunpack.c.h.b16 %v389
    %v461 = vunpack.c.l.b16 %v390
    %v462 = vunpack.c.h.b16 %v390
    %v463 = vunpack.c.l.b16 %v391
    %v464 = vunpack.c.h.b16 %v391
    %v465 = vunpack.c.l.b16 %v392
    %v466 = vunpack.c.h.b16 %v392
    %v467 = vunpack.c.l.b16 %v393
    %v468 = vunpack.c.h.b16 %v393
    %v469 = vunpack.c.l.b16 %v394
    %v470 = vunpack.c.h.b16 %v394
    %v471 = vunpack.c.l.b16 %v395
    %v472 = vunpack.c.h.b16 %v395
    %v473 = vunpack.c.l.b16 %v396
    %v474 = vunpack.c.h.b16 %v396
    %v475 = vunpack.c.l.b16 %v397
    %v476 = vunpack.c.h.b16 %v397
    %v477 = vunpack.c.l.b16 %v398
    %v478 = vunpack.c.h.b16 %v398
    %v479 = vunpack.c.l.b16 %v399
    %v480 = vunpack.c.h.b16 %v399
    %v481 = vunpack.c.l.b16 %v400
    %v482 = vunpack.c.h.b16 %v400
    %v483 = vunpack.c.l.b16 %v401
    %v484 = vunpack.c.h.b16 %v401
    %v485 = vunpack.c.l.b16 %v402
    %v486 = vunpack.c.h.b16 %v402
    %v487 = vunpack.c.l.b16 %v403
    %v488 = vunpack.c.h.b16 %v403
    %v489 = vunpack.c.l.b16 %v404
    %v490 = vunpack.c.h.b16 %v404
    %v491 = vunpack.c.l.b16 %v405
    %v492 = vunpack.c.h.b16 %v405
    %v493 = vunpack.c.l.b16 %v406
    %v494 = vunpack.c.h.b16 %v406
    %v495 = vunpack.c.l.b16 %v407
    %v496 = vunpack.c.h.b16 %v407
    %v497 = vunpack.c.l.b16 %v408
    %v498 = vunpack.c.h.b16 %v408
    %v499 = vunpack.c.l.b16 %v409
    %v500 = vunpack.c.h.b16 %v409
    %v501 = vunpack.c.l.b16 %v410
    %v502 = vunpack.c.h.b16 %v410
    %v503 = vunpack.c.l.b16 %v411
    %v504 = vunpack.c.h.b16 %v411
    %v505 = vunpack.c.l.b16 %v412
    %v506 = vunpack.c.h.b16 %v412
    %v507 = vunpack.c.l.b16 %v413
    %v508 = vunpack.c.h.b16 %v413
    %v509 = vunpack.c.l.b16 %v414
    %v510 = vunpack.c.h.b16 %v414
    %v511 = vpack.c.b16 %v449, %v447
    %v512 = vpack.c.b16 %v450, %v448
    %v513 = vpack.c.b16 %v453, %v451
    %v514 = vpack.c.b16 %v454, %v452
    %v515 = vpack.c.b16 %v457, %v455
    %v516 = vpack.c.b16 %v458, %v456
    %v517 = vpack.c.b16 %v461, %v459
    %v518 = vpack.c.b16 %v462, %v460
    %v519 = vpack.c.b16 %v465, %v463
    %v520 = vpack.c.b16 %v466, %v464
    %v521 = vpack.c.b16 %v469, %v467
    %v522 = vpack.c.b16 %v470, %v468
    %v523 = vpack.c.b16 %v473, %v471
    %v524 = vpack.c.b16 %v474, %v472
    %v525 = vpack.c.b16 %v477, %v475
    %v526 = vpack.c.b16 %v478, %v476
    %v527 = vpack.c.b16 %v481, %v479
    %v528 = vpack.c.b16 %v482, %v480
    %v529 = vpack.c.b16 %v485, %v483
    %v530 = vpack.c.b16 %v486, %v484
    %v531 = vpack.c.b16 %v489, %v487
    %v532 = vpack.c.b16 %v490, %v488
    %v533 = vpack.c.b16 %v493, %v491
    %v534 = vpack.c.b16 %v494, %v492
    %v535 = vpack.c.b16 %v497, %v495
    %v536 = vpack.c.b16 %v498, %v496
    %v537 = vpack.c.b16 %v501, %v499
    %v538 = vpack.c.b16 %v502, %v500
    %v539 = vpack.c.b16 %v505, %v503
    %v540 = vpack.c.b16 %v506, %v504
    %v541 = vpack.c.b16 %v509, %v507
    %v542 = vpack.c.b16 %v510, %v508
    %575 = vmatpush.bf16.msra.mxu0 %v525
    %576 = vmatpush.bf16.msra.mxu0 %v523
    %577 = vmatpush.bf16.msra.mxu0 %v521
    %578 = vmatpush.bf16.msra.mxu0 %v519
    %579 = vmatpush.bf16.msra.mxu0 %v517
    %580 = vmatpush.bf16.msra.mxu0 %v515
    %581 = vmatpush.bf16.msra.mxu0 %v513
    %582 = vmatpush.bf16.msra.mxu0 %v511
    %583 = vmatmul.bf16.gmra.mxu0 %v380
    %v584 = vpop.f32.mrf.mxu0
    %v585 = vadd.f32 0.0, %v584
    %v586 = vpop.f32.mrf.mxu0
    %587 = vdwg.mxu0
    %588 = vmatpush.bf16.msra.mxu0 %v541
    %589 = vmatpush.bf16.msra.mxu0 %v539
    %590 = vmatpush.bf16.msra.mxu0 %v537
    %591 = vmatpush.bf16.msra.mxu0 %v535
    %592 = vmatpush.bf16.msra.mxu0 %v533
    %593 = vmatpush.bf16.msra.mxu0 %v531
    %594 = vmatpush.bf16.msra.mxu0 %v529
    %595 = vmatpush.bf16.msra.mxu0 %v527
    %596 = vmatmul.bf16.gmra.mxu0 %v381
    %v597 = vpop.f32.mrf.mxu0
    %v598 = vadd.f32 %v585, %v597
    %v599 = vpop.f32.mrf.mxu0
    %600 = vdwg.mxu0
    %601 = vmatpush.bf16.msra.mxu0 %v526
    %602 = vmatpush.bf16.msra.mxu0 %v524
    %603 = vmatpush.bf16.msra.mxu0 %v522
    %604 = vmatpush.bf16.msra.mxu0 %v520
    %605 = vmatpush.bf16.msra.mxu0 %v518
    %606 = vmatpush.bf16.msra.mxu0 %v516
    %607 = vmatpush.bf16.msra.mxu0 %v514
    %608 = vmatpush.bf16.msra.mxu0 %v512
    %609 = vmatmul.bf16.gmra.mxu0 %v380
    %v610 = vpop.f32.mrf.mxu0
    %v611 = vadd.f32 0.0, %v610
    %v612 = vpop.f32.mrf.mxu0
    %613 = vdwg.mxu0
    %614 = vmatpush.bf16.msra.mxu0 %v542
    %615 = vmatpush.bf16.msra.mxu0 %v540
    %616 = vmatpush.bf16.msra.mxu0 %v538
    %617 = vmatpush.bf16.msra.mxu0 %v536
    %618 = vmatpush.bf16.msra.mxu0 %v534
    %619 = vmatpush.bf16.msra.mxu0 %v532
    %620 = vmatpush.bf16.msra.mxu0 %v530
    %621 = vmatpush.bf16.msra.mxu0 %v528
    %622 = vmatmul.bf16.gmra.mxu0 %v381
    %v623 = vpop.f32.mrf.mxu0
    %v624 = vadd.f32 %v611, %v623
    %v625 = vpop.f32.mrf.mxu0
    %626 = vdwg.mxu0
    %v627 = vrot.slane %v598, 4
    %v628 = vadd.f32 %v598, %v627
    %v629 = vrot.slane %v628, 2
    %v630 = vadd.f32 %v628, %v629
    %v631 = vrot.slane %v630, 1
    %v632 = vadd.f32 %v630, %v631
    %v633 = vrot.slane %v624, 4
    %v634 = vadd.f32 %v624, %v633
    %v635 = vrot.slane %v634, 2
    %v636 = vadd.f32 %v634, %v635
    %v637 = vrot.slane %v636, 1
    %v638 = vadd.f32 %v636, %v637
    %v639 = vmul.f32 %v632, 0.125
    %v640 = vmul.f32 %v638, 0.125
    %v641 = vmul.f32 %v598, %v598
    %v642 = vmul.f32 %v624, %v624
    %v643 = vrot.slane %v641, 4
    %v644 = vadd.f32 %v641, %v643
    %v645 = vrot.slane %v644, 2
    %v646 = vadd.f32 %v644, %v645
    %v647 = vrot.slane %v646, 1
    %v648 = vadd.f32 %v646, %v647
    %v649 = vrot.slane %v642, 4
    %v650 = vadd.f32 %v642, %v649
    %v651 = vrot.slane %v650, 2
    %v652 = vadd.f32 %v650, %v651
    %v653 = vrot.slane %v652, 1
    %v654 = vadd.f32 %v652, %v653
    %v655 = vmul.f32 %v648, 0.125
    %v656 = vmul.f32 %v654, 0.125
    %v657 = vmul.f32 %v639, %v639
    %v658 = vmul.f32 %v640, %v640
    %v659 = vsub.f32 %v655, %v657
    %v660 = vsub.f32 %v656, %v658
    %v661 = vmax.f32 %v659, 0.0
    %v662 = vmax.f32 %v660, 0.0
    %s663 = scalar_lea.vmem %s2, 2
    %v664 = vld [vmem:[%s663] sm:$0x3]
    %v665 = vadd.f32 %v661, 1e-05
    %v666 = vadd.f32 %v662, 1e-05
    %v667 = vrsqrt.pop %v665
    %v668 = vmul.f32 %v667, %v665
    %v669 = vmul.f32 %v668, %v667
    %v670 = vmul.f32 0.5, %v669
    %v671 = vsub.f32 1.5, %v670
    %v672 = vmul.f32 %v667, %v671
    %vm673 = vweird.f32 %v665
    %vm674 = vweird.f32 %v667
    %vm675 = vmor %vm673, %vm674
    %v676 = vsel %vm675, %v667, %v672
    %v677 = vrsqrt.pop %v666
    %v678 = vmul.f32 %v677, %v666
    %v679 = vmul.f32 %v678, %v677
    %v680 = vmul.f32 0.5, %v679
    %v681 = vsub.f32 1.5, %v680
    %v682 = vmul.f32 %v677, %v681
    %vm683 = vweird.f32 %v666
    %vm684 = vweird.f32 %v677
    %vm685 = vmor %vm683, %vm684
    %v686 = vsel %vm685, %v677, %v682
    %v689 = vrot.slane %v686, 7
    %v690 = vsel %vm351, %v676, %v689
    %v692 = vmul.f32 %v664, %v690
    %s693 = scalar_lea.vmem %s3, 2
    %v694 = vld [vmem:[%s693] sm:$0x3]
    %v696 = vperm.slane %v692, 0
    %v697 = vperm.slane %v692, 1
    %v700 = vmul.f32 %v639, %v696
    %v701 = vmul.f32 %v640, %v697
    %v704 = vrot.slane %v701, 7
    %v705 = vsel %vm351, %v700, %v704
    %v707 = vsub.f32 %v694, %v705
    %v708 = vmul.f32 %v598, %v696
    %v709 = vmul.f32 %v624, %v697
    %v711 = vperm.slane %v707, 0
    %v712 = vperm.slane %v707, 1
    %v715 = vadd.f32 %v708, %v711
    %v716 = vadd.f32 %v709, %v712
    %v717 = vmax.f32 %v715, 0.0
    %v718 = vmax.f32 %v716, 0.0
    %v719 = vpack.c.bf16 %v717, %v717
    %v720 = vpack.c.bf16 %v718, %v718
    %s721 = scalar_lea.vmem [#allocation3], 512
    %v722 = vld [vmem:[%s721] sm:$0xff]
    %v723 = vld [vmem:[%s721 + $0x8] sm:$0xff]
    %v724 = vld [vmem:[%s721 + $0x10] sm:$0xff]
    %v725 = vld [vmem:[%s721 + $0x18] sm:$0xff]
    %v726 = vld [vmem:[%s721 + $0x20] sm:$0xff]
    %v727 = vld [vmem:[%s721 + $0x28] sm:$0xff]
    %v728 = vld [vmem:[%s721 + $0x30] sm:$0xff]
    %v729 = vld [vmem:[%s721 + $0x38] sm:$0xff]
    %v730 = vld [vmem:[%s721 + $0x40] sm:$0xff]
    %v731 = vld [vmem:[%s721 + $0x48] sm:$0xff]
    %v732 = vld [vmem:[%s721 + $0x50] sm:$0xff]
    %v733 = vld [vmem:[%s721 + $0x58] sm:$0xff]
    %v734 = vld [vmem:[%s721 + $0x60] sm:$0xff]
    %v735 = vld [vmem:[%s721 + $0x68] sm:$0xff]
    %v736 = vld [vmem:[%s721 + $0x70] sm:$0xff]
    %v737 = vld [vmem:[%s721 + $0x78] sm:$0xff]
    %v738 = vld [vmem:[%s721 + $0x80] sm:$0xff]
    %v739 = vld [vmem:[%s721 + $0x88] sm:$0xff]
    %v740 = vld [vmem:[%s721 + $0x90] sm:$0xff]
    %v741 = vld [vmem:[%s721 + $0x98] sm:$0xff]
    %v742 = vld [vmem:[%s721 + $0xa0] sm:$0xff]
    %v743 = vld [vmem:[%s721 + $0xa8] sm:$0xff]
    %v744 = vld [vmem:[%s721 + $0xb0] sm:$0xff]
    %v745 = vld [vmem:[%s721 + $0xb8] sm:$0xff]
    %v746 = vld [vmem:[%s721 + $0xc0] sm:$0xff]
    %v747 = vld [vmem:[%s721 + $0xc8] sm:$0xff]
    %v748 = vld [vmem:[%s721 + $0xd0] sm:$0xff]
    %v749 = vld [vmem:[%s721 + $0xd8] sm:$0xff]
    %v750 = vld [vmem:[%s721 + $0xe0] sm:$0xff]
    %v751 = vld [vmem:[%s721 + $0xe8] sm:$0xff]
    %v752 = vld [vmem:[%s721 + $0xf0] sm:$0xff]
    %v753 = vld [vmem:[%s721 + $0xf8] sm:$0xff]
    %v786 = vunpack.c.l.b16 %v722
    %v787 = vunpack.c.h.b16 %v722
    %v788 = vunpack.c.l.b16 %v723
    %v789 = vunpack.c.h.b16 %v723
    %v790 = vunpack.c.l.b16 %v724
    %v791 = vunpack.c.h.b16 %v724
    %v792 = vunpack.c.l.b16 %v725
    %v793 = vunpack.c.h.b16 %v725
    %v794 = vunpack.c.l.b16 %v726
    %v795 = vunpack.c.h.b16 %v726
    %v796 = vunpack.c.l.b16 %v727
    %v797 = vunpack.c.h.b16 %v727
    %v798 = vunpack.c.l.b16 %v728
    %v799 = vunpack.c.h.b16 %v728
    %v800 = vunpack.c.l.b16 %v729
    %v801 = vunpack.c.h.b16 %v729
    %v802 = vunpack.c.l.b16 %v730
    %v803 = vunpack.c.h.b16 %v730
    %v804 = vunpack.c.l.b16 %v731
    %v805 = vunpack.c.h.b16 %v731
    %v806 = vunpack.c.l.b16 %v732
    %v807 = vunpack.c.h.b16 %v732
    %v808 = vunpack.c.l.b16 %v733
    %v809 = vunpack.c.h.b16 %v733
    %v810 = vunpack.c.l.b16 %v734
    %v811 = vunpack.c.h.b16 %v734
    %v812 = vunpack.c.l.b16 %v735
    %v813 = vunpack.c.h.b16 %v735
    %v814 = vunpack.c.l.b16 %v736
    %v815 = vunpack.c.h.b16 %v736
    %v816 = vunpack.c.l.b16 %v737
    %v817 = vunpack.c.h.b16 %v737
    %v818 = vunpack.c.l.b16 %v738
    %v819 = vunpack.c.h.b16 %v738
    %v820 = vunpack.c.l.b16 %v739
    %v821 = vunpack.c.h.b16 %v739
    %v822 = vunpack.c.l.b16 %v740
    %v823 = vunpack.c.h.b16 %v740
    %v824 = vunpack.c.l.b16 %v741
    %v825 = vunpack.c.h.b16 %v741
    %v826 = vunpack.c.l.b16 %v742
    %v827 = vunpack.c.h.b16 %v742
    %v828 = vunpack.c.l.b16 %v743
    %v829 = vunpack.c.h.b16 %v743
    %v830 = vunpack.c.l.b16 %v744
    %v831 = vunpack.c.h.b16 %v744
    %v832 = vunpack.c.l.b16 %v745
    %v833 = vunpack.c.h.b16 %v745
    %v834 = vunpack.c.l.b16 %v746
    %v835 = vunpack.c.h.b16 %v746
    %v836 = vunpack.c.l.b16 %v747
    %v837 = vunpack.c.h.b16 %v747
    %v838 = vunpack.c.l.b16 %v748
    %v839 = vunpack.c.h.b16 %v748
    %v840 = vunpack.c.l.b16 %v749
    %v841 = vunpack.c.h.b16 %v749
    %v842 = vunpack.c.l.b16 %v750
    %v843 = vunpack.c.h.b16 %v750
    %v844 = vunpack.c.l.b16 %v751
    %v845 = vunpack.c.h.b16 %v751
    %v846 = vunpack.c.l.b16 %v752
    %v847 = vunpack.c.h.b16 %v752
    %v848 = vunpack.c.l.b16 %v753
    %v849 = vunpack.c.h.b16 %v753
    %v850 = vpack.c.b16 %v788, %v786
    %v851 = vpack.c.b16 %v789, %v787
    %v852 = vpack.c.b16 %v792, %v790
    %v853 = vpack.c.b16 %v793, %v791
    %v854 = vpack.c.b16 %v796, %v794
    %v855 = vpack.c.b16 %v797, %v795
    %v856 = vpack.c.b16 %v800, %v798
    %v857 = vpack.c.b16 %v801, %v799
    %v858 = vpack.c.b16 %v804, %v802
    %v859 = vpack.c.b16 %v805, %v803
    %v860 = vpack.c.b16 %v808, %v806
    %v861 = vpack.c.b16 %v809, %v807
    %v862 = vpack.c.b16 %v812, %v810
    %v863 = vpack.c.b16 %v813, %v811
    %v864 = vpack.c.b16 %v816, %v814
    %v865 = vpack.c.b16 %v817, %v815
    %v866 = vpack.c.b16 %v820, %v818
    %v867 = vpack.c.b16 %v821, %v819
    %v868 = vpack.c.b16 %v824, %v822
    %v869 = vpack.c.b16 %v825, %v823
    %v870 = vpack.c.b16 %v828, %v826
    %v871 = vpack.c.b16 %v829, %v827
    %v872 = vpack.c.b16 %v832, %v830
    %v873 = vpack.c.b16 %v833, %v831
    %v874 = vpack.c.b16 %v836, %v834
    %v875 = vpack.c.b16 %v837, %v835
    %v876 = vpack.c.b16 %v840, %v838
    %v877 = vpack.c.b16 %v841, %v839
    %v878 = vpack.c.b16 %v844, %v842
    %v879 = vpack.c.b16 %v845, %v843
    %v880 = vpack.c.b16 %v848, %v846
    %v881 = vpack.c.b16 %v849, %v847
    %914 = vmatpush.bf16.msra.mxu0 %v864
    %915 = vmatpush.bf16.msra.mxu0 %v862
    %916 = vmatpush.bf16.msra.mxu0 %v860
    %917 = vmatpush.bf16.msra.mxu0 %v858
    %918 = vmatpush.bf16.msra.mxu0 %v856
    %919 = vmatpush.bf16.msra.mxu0 %v854
    %920 = vmatpush.bf16.msra.mxu0 %v852
    %921 = vmatpush.bf16.msra.mxu0 %v850
    %922 = vmatmul.bf16.gmra.mxu0 %v719
    %v923 = vpop.f32.mrf.mxu0
    %v924 = vadd.f32 0.0, %v923
    %v925 = vpop.f32.mrf.mxu0
    %926 = vdwg.mxu0
    %927 = vmatpush.bf16.msra.mxu0 %v880
    %928 = vmatpush.bf16.msra.mxu0 %v878
    %929 = vmatpush.bf16.msra.mxu0 %v876
    %930 = vmatpush.bf16.msra.mxu0 %v874
    %931 = vmatpush.bf16.msra.mxu0 %v872
    %932 = vmatpush.bf16.msra.mxu0 %v870
    %933 = vmatpush.bf16.msra.mxu0 %v868
    %934 = vmatpush.bf16.msra.mxu0 %v866
    %935 = vmatmul.bf16.gmra.mxu0 %v720
    %v936 = vpop.f32.mrf.mxu0
    %v937 = vadd.f32 %v924, %v936
    %v938 = vpop.f32.mrf.mxu0
    %939 = vdwg.mxu0
    %940 = vmatpush.bf16.msra.mxu0 %v865
    %941 = vmatpush.bf16.msra.mxu0 %v863
    %942 = vmatpush.bf16.msra.mxu0 %v861
    %943 = vmatpush.bf16.msra.mxu0 %v859
    %944 = vmatpush.bf16.msra.mxu0 %v857
    %945 = vmatpush.bf16.msra.mxu0 %v855
    %946 = vmatpush.bf16.msra.mxu0 %v853
    %947 = vmatpush.bf16.msra.mxu0 %v851
    %948 = vmatmul.bf16.gmra.mxu0 %v719
    %v949 = vpop.f32.mrf.mxu0
    %v950 = vadd.f32 0.0, %v949
    %v951 = vpop.f32.mrf.mxu0
    %952 = vdwg.mxu0
    %953 = vmatpush.bf16.msra.mxu0 %v881
    %954 = vmatpush.bf16.msra.mxu0 %v879
    %955 = vmatpush.bf16.msra.mxu0 %v877
    %956 = vmatpush.bf16.msra.mxu0 %v875
    %957 = vmatpush.bf16.msra.mxu0 %v873
    %958 = vmatpush.bf16.msra.mxu0 %v871
    %959 = vmatpush.bf16.msra.mxu0 %v869
    %960 = vmatpush.bf16.msra.mxu0 %v867
    %961 = vmatmul.bf16.gmra.mxu0 %v720
    %v962 = vpop.f32.mrf.mxu0
    %v963 = vadd.f32 %v950, %v962
    %v964 = vpop.f32.mrf.mxu0
    %965 = vdwg.mxu0
    %v966 = vrot.slane %v937, 4
    %v967 = vadd.f32 %v937, %v966
    %v968 = vrot.slane %v967, 2
    %v969 = vadd.f32 %v967, %v968
    %v970 = vrot.slane %v969, 1
    %v971 = vadd.f32 %v969, %v970
    %v972 = vrot.slane %v963, 4
    %v973 = vadd.f32 %v963, %v972
    %v974 = vrot.slane %v973, 2
    %v975 = vadd.f32 %v973, %v974
    %v976 = vrot.slane %v975, 1
    %v977 = vadd.f32 %v975, %v976
    %v978 = vmul.f32 %v971, 0.125
    %v979 = vmul.f32 %v977, 0.125
    %v980 = vmul.f32 %v937, %v937
    %v981 = vmul.f32 %v963, %v963
    %v982 = vrot.slane %v980, 4
    %v983 = vadd.f32 %v980, %v982
    %v984 = vrot.slane %v983, 2
    %v985 = vadd.f32 %v983, %v984
    %v986 = vrot.slane %v985, 1
    %v987 = vadd.f32 %v985, %v986
    %v988 = vrot.slane %v981, 4
    %v989 = vadd.f32 %v981, %v988
    %v990 = vrot.slane %v989, 2
    %v991 = vadd.f32 %v989, %v990
    %v992 = vrot.slane %v991, 1
    %v993 = vadd.f32 %v991, %v992
    %v994 = vmul.f32 %v987, 0.125
    %v995 = vmul.f32 %v993, 0.125
    %v996 = vmul.f32 %v978, %v978
    %v997 = vmul.f32 %v979, %v979
    %v998 = vsub.f32 %v994, %v996
    %v999 = vsub.f32 %v995, %v997
    %v1000 = vmax.f32 %v998, 0.0
    %v1001 = vmax.f32 %v999, 0.0
    %s1002 = scalar_lea.vmem %s2, 4
    %v1003 = vld [vmem:[%s1002] sm:$0x3]
    %v1004 = vadd.f32 %v1000, 1e-05
    %v1005 = vadd.f32 %v1001, 1e-05
    %v1006 = vrsqrt.pop %v1004
    %v1007 = vmul.f32 %v1006, %v1004
    %v1008 = vmul.f32 %v1007, %v1006
    %v1009 = vmul.f32 0.5, %v1008
    %v1010 = vsub.f32 1.5, %v1009
    %v1011 = vmul.f32 %v1006, %v1010
    %vm1012 = vweird.f32 %v1004
    %vm1013 = vweird.f32 %v1006
    %vm1014 = vmor %vm1012, %vm1013
    %v1015 = vsel %vm1014, %v1006, %v1011
    %v1016 = vrsqrt.pop %v1005
    %v1017 = vmul.f32 %v1016, %v1005
    %v1018 = vmul.f32 %v1017, %v1016
    %v1019 = vmul.f32 0.5, %v1018
    %v1020 = vsub.f32 1.5, %v1019
    %v1021 = vmul.f32 %v1016, %v1020
    %vm1022 = vweird.f32 %v1005
    %vm1023 = vweird.f32 %v1016
    %vm1024 = vmor %vm1022, %vm1023
    %v1025 = vsel %vm1024, %v1016, %v1021
    %v1028 = vrot.slane %v1025, 7
    %v1029 = vsel %vm351, %v1015, %v1028
    %v1031 = vmul.f32 %v1003, %v1029
    %s1032 = scalar_lea.vmem %s3, 4
    %v1033 = vld [vmem:[%s1032] sm:$0x3]
    %v1035 = vperm.slane %v1031, 0
    %v1036 = vperm.slane %v1031, 1
    %v1039 = vmul.f32 %v978, %v1035
    %v1040 = vmul.f32 %v979, %v1036
    %v1043 = vrot.slane %v1040, 7
    %v1044 = vsel %vm351, %v1039, %v1043
    %v1046 = vsub.f32 %v1033, %v1044
    %v1047 = vmul.f32 %v937, %v1035
    %v1048 = vmul.f32 %v963, %v1036
    %v1050 = vperm.slane %v1046, 0
    %v1051 = vperm.slane %v1046, 1
    %v1054 = vadd.f32 %v1047, %v1050
    %v1055 = vadd.f32 %v1048, %v1051
    %v1056 = vmax.f32 %v1054, 0.0
    %v1057 = vmax.f32 %v1055, 0.0
    %v1058 = vpack.c.bf16 %v1056, %v1056
    %v1059 = vpack.c.bf16 %v1057, %v1057
    %s1060 = scalar_lea.vmem [#allocation3], 768
    %v1061 = vld [vmem:[%s1060] sm:$0xff]
    %v1062 = vld [vmem:[%s1060 + $0x8] sm:$0xff]
    %v1063 = vld [vmem:[%s1060 + $0x10] sm:$0xff]
    %v1064 = vld [vmem:[%s1060 + $0x18] sm:$0xff]
    %v1065 = vld [vmem:[%s1060 + $0x20] sm:$0xff]
    %v1066 = vld [vmem:[%s1060 + $0x28] sm:$0xff]
    %v1067 = vld [vmem:[%s1060 + $0x30] sm:$0xff]
    %v1068 = vld [vmem:[%s1060 + $0x38] sm:$0xff]
    %v1069 = vld [vmem:[%s1060 + $0x40] sm:$0xff]
    %v1070 = vld [vmem:[%s1060 + $0x48] sm:$0xff]
    %v1071 = vld [vmem:[%s1060 + $0x50] sm:$0xff]
    %v1072 = vld [vmem:[%s1060 + $0x58] sm:$0xff]
    %v1073 = vld [vmem:[%s1060 + $0x60] sm:$0xff]
    %v1074 = vld [vmem:[%s1060 + $0x68] sm:$0xff]
    %v1075 = vld [vmem:[%s1060 + $0x70] sm:$0xff]
    %v1076 = vld [vmem:[%s1060 + $0x78] sm:$0xff]
    %v1077 = vld [vmem:[%s1060 + $0x80] sm:$0xff]
    %v1078 = vld [vmem:[%s1060 + $0x88] sm:$0xff]
    %v1079 = vld [vmem:[%s1060 + $0x90] sm:$0xff]
    %v1080 = vld [vmem:[%s1060 + $0x98] sm:$0xff]
    %v1081 = vld [vmem:[%s1060 + $0xa0] sm:$0xff]
    %v1082 = vld [vmem:[%s1060 + $0xa8] sm:$0xff]
    %v1083 = vld [vmem:[%s1060 + $0xb0] sm:$0xff]
    %v1084 = vld [vmem:[%s1060 + $0xb8] sm:$0xff]
    %v1085 = vld [vmem:[%s1060 + $0xc0] sm:$0xff]
    %v1086 = vld [vmem:[%s1060 + $0xc8] sm:$0xff]
    %v1087 = vld [vmem:[%s1060 + $0xd0] sm:$0xff]
    %v1088 = vld [vmem:[%s1060 + $0xd8] sm:$0xff]
    %v1089 = vld [vmem:[%s1060 + $0xe0] sm:$0xff]
    %v1090 = vld [vmem:[%s1060 + $0xe8] sm:$0xff]
    %v1091 = vld [vmem:[%s1060 + $0xf0] sm:$0xff]
    %v1092 = vld [vmem:[%s1060 + $0xf8] sm:$0xff]
    %v1125 = vunpack.c.l.b16 %v1061
    %v1126 = vunpack.c.h.b16 %v1061
    %v1127 = vunpack.c.l.b16 %v1062
    %v1128 = vunpack.c.h.b16 %v1062
    %v1129 = vunpack.c.l.b16 %v1063
    %v1130 = vunpack.c.h.b16 %v1063
    %v1131 = vunpack.c.l.b16 %v1064
    %v1132 = vunpack.c.h.b16 %v1064
    %v1133 = vunpack.c.l.b16 %v1065
    %v1134 = vunpack.c.h.b16 %v1065
    %v1135 = vunpack.c.l.b16 %v1066
    %v1136 = vunpack.c.h.b16 %v1066
    %v1137 = vunpack.c.l.b16 %v1067
    %v1138 = vunpack.c.h.b16 %v1067
    %v1139 = vunpack.c.l.b16 %v1068
    %v1140 = vunpack.c.h.b16 %v1068
    %v1141 = vunpack.c.l.b16 %v1069
    %v1142 = vunpack.c.h.b16 %v1069
    %v1143 = vunpack.c.l.b16 %v1070
    %v1144 = vunpack.c.h.b16 %v1070
    %v1145 = vunpack.c.l.b16 %v1071
    %v1146 = vunpack.c.h.b16 %v1071
    %v1147 = vunpack.c.l.b16 %v1072
    %v1148 = vunpack.c.h.b16 %v1072
    %v1149 = vunpack.c.l.b16 %v1073
    %v1150 = vunpack.c.h.b16 %v1073
    %v1151 = vunpack.c.l.b16 %v1074
    %v1152 = vunpack.c.h.b16 %v1074
    %v1153 = vunpack.c.l.b16 %v1075
    %v1154 = vunpack.c.h.b16 %v1075
    %v1155 = vunpack.c.l.b16 %v1076
    %v1156 = vunpack.c.h.b16 %v1076
    %v1157 = vunpack.c.l.b16 %v1077
    %v1158 = vunpack.c.h.b16 %v1077
    %v1159 = vunpack.c.l.b16 %v1078
    %v1160 = vunpack.c.h.b16 %v1078
    %v1161 = vunpack.c.l.b16 %v1079
    %v1162 = vunpack.c.h.b16 %v1079
    %v1163 = vunpack.c.l.b16 %v1080
    %v1164 = vunpack.c.h.b16 %v1080
    %v1165 = vunpack.c.l.b16 %v1081
    %v1166 = vunpack.c.h.b16 %v1081
    %v1167 = vunpack.c.l.b16 %v1082
    %v1168 = vunpack.c.h.b16 %v1082
    %v1169 = vunpack.c.l.b16 %v1083
    %v1170 = vunpack.c.h.b16 %v1083
    %v1171 = vunpack.c.l.b16 %v1084
    %v1172 = vunpack.c.h.b16 %v1084
    %v1173 = vunpack.c.l.b16 %v1085
    %v1174 = vunpack.c.h.b16 %v1085
    %v1175 = vunpack.c.l.b16 %v1086
    %v1176 = vunpack.c.h.b16 %v1086
    %v1177 = vunpack.c.l.b16 %v1087
    %v1178 = vunpack.c.h.b16 %v1087
    %v1179 = vunpack.c.l.b16 %v1088
    %v1180 = vunpack.c.h.b16 %v1088
    %v1181 = vunpack.c.l.b16 %v1089
    %v1182 = vunpack.c.h.b16 %v1089
    %v1183 = vunpack.c.l.b16 %v1090
    %v1184 = vunpack.c.h.b16 %v1090
    %v1185 = vunpack.c.l.b16 %v1091
    %v1186 = vunpack.c.h.b16 %v1091
    %v1187 = vunpack.c.l.b16 %v1092
    %v1188 = vunpack.c.h.b16 %v1092
    %v1189 = vpack.c.b16 %v1127, %v1125
    %v1190 = vpack.c.b16 %v1128, %v1126
    %v1191 = vpack.c.b16 %v1131, %v1129
    %v1192 = vpack.c.b16 %v1132, %v1130
    %v1193 = vpack.c.b16 %v1135, %v1133
    %v1194 = vpack.c.b16 %v1136, %v1134
    %v1195 = vpack.c.b16 %v1139, %v1137
    %v1196 = vpack.c.b16 %v1140, %v1138
    %v1197 = vpack.c.b16 %v1143, %v1141
    %v1198 = vpack.c.b16 %v1144, %v1142
    %v1199 = vpack.c.b16 %v1147, %v1145
    %v1200 = vpack.c.b16 %v1148, %v1146
    %v1201 = vpack.c.b16 %v1151, %v1149
    %v1202 = vpack.c.b16 %v1152, %v1150
    %v1203 = vpack.c.b16 %v1155, %v1153
    %v1204 = vpack.c.b16 %v1156, %v1154
    %v1205 = vpack.c.b16 %v1159, %v1157
    %v1206 = vpack.c.b16 %v1160, %v1158
    %v1207 = vpack.c.b16 %v1163, %v1161
    %v1208 = vpack.c.b16 %v1164, %v1162
    %v1209 = vpack.c.b16 %v1167, %v1165
    %v1210 = vpack.c.b16 %v1168, %v1166
    %v1211 = vpack.c.b16 %v1171, %v1169
    %v1212 = vpack.c.b16 %v1172, %v1170
    %v1213 = vpack.c.b16 %v1175, %v1173
    %v1214 = vpack.c.b16 %v1176, %v1174
    %v1215 = vpack.c.b16 %v1179, %v1177
    %v1216 = vpack.c.b16 %v1180, %v1178
    %v1217 = vpack.c.b16 %v1183, %v1181
    %v1218 = vpack.c.b16 %v1184, %v1182
    %v1219 = vpack.c.b16 %v1187, %v1185
    %v1220 = vpack.c.b16 %v1188, %v1186
    %1253 = vmatpush.bf16.msra.mxu0 %v1203
    %1254 = vmatpush.bf16.msra.mxu0 %v1201
    %1255 = vmatpush.bf16.msra.mxu0 %v1199
    %1256 = vmatpush.bf16.msra.mxu0 %v1197
    %1257 = vmatpush.bf16.msra.mxu0 %v1195
    %1258 = vmatpush.bf16.msra.mxu0 %v1193
    %1259 = vmatpush.bf16.msra.mxu0 %v1191
    %1260 = vmatpush.bf16.msra.mxu0 %v1189
    %1261 = vmatmul.bf16.gmra.mxu0 %v1058
    %v1262 = vpop.f32.mrf.mxu0
    %v1263 = vadd.f32 0.0, %v1262
    %v1264 = vpop.f32.mrf.mxu0
    %1265 = vdwg.mxu0
    %1266 = vmatpush.bf16.msra.mxu0 %v1219
    %1267 = vmatpush.bf16.msra.mxu0 %v1217
    %1268 = vmatpush.bf16.msra.mxu0 %v1215
    %1269 = vmatpush.bf16.msra.mxu0 %v1213
    %1270 = vmatpush.bf16.msra.mxu0 %v1211
    %1271 = vmatpush.bf16.msra.mxu0 %v1209
    %1272 = vmatpush.bf16.msra.mxu0 %v1207
    %1273 = vmatpush.bf16.msra.mxu0 %v1205
    %1274 = vmatmul.bf16.gmra.mxu0 %v1059
    %v1275 = vpop.f32.mrf.mxu0
    %v1276 = vadd.f32 %v1263, %v1275
    %v1277 = vpop.f32.mrf.mxu0
    %1278 = vdwg.mxu0
    %1279 = vmatpush.bf16.msra.mxu0 %v1204
    %1280 = vmatpush.bf16.msra.mxu0 %v1202
    %1281 = vmatpush.bf16.msra.mxu0 %v1200
    %1282 = vmatpush.bf16.msra.mxu0 %v1198
    %1283 = vmatpush.bf16.msra.mxu0 %v1196
    %1284 = vmatpush.bf16.msra.mxu0 %v1194
    %1285 = vmatpush.bf16.msra.mxu0 %v1192
    %1286 = vmatpush.bf16.msra.mxu0 %v1190
    %1287 = vmatmul.bf16.gmra.mxu0 %v1058
    %v1288 = vpop.f32.mrf.mxu0
    %v1289 = vadd.f32 0.0, %v1288
    %v1290 = vpop.f32.mrf.mxu0
    %1291 = vdwg.mxu0
    %1292 = vmatpush.bf16.msra.mxu0 %v1220
    %1293 = vmatpush.bf16.msra.mxu0 %v1218
    %1294 = vmatpush.bf16.msra.mxu0 %v1216
    %1295 = vmatpush.bf16.msra.mxu0 %v1214
    %1296 = vmatpush.bf16.msra.mxu0 %v1212
    %1297 = vmatpush.bf16.msra.mxu0 %v1210
    %1298 = vmatpush.bf16.msra.mxu0 %v1208
    %1299 = vmatpush.bf16.msra.mxu0 %v1206
    %1300 = vmatmul.bf16.gmra.mxu0 %v1059
    %v1301 = vpop.f32.mrf.mxu0
    %v1302 = vadd.f32 %v1289, %v1301
    %v1303 = vpop.f32.mrf.mxu0
    %1304 = vdwg.mxu0
    %v1305 = vrot.slane %v1276, 4
    %v1306 = vadd.f32 %v1276, %v1305
    %v1307 = vrot.slane %v1306, 2
    %v1308 = vadd.f32 %v1306, %v1307
    %v1309 = vrot.slane %v1308, 1
    %v1310 = vadd.f32 %v1308, %v1309
    %v1311 = vrot.slane %v1302, 4
    %v1312 = vadd.f32 %v1302, %v1311
    %v1313 = vrot.slane %v1312, 2
    %v1314 = vadd.f32 %v1312, %v1313
    %v1315 = vrot.slane %v1314, 1
    %v1316 = vadd.f32 %v1314, %v1315
    %v1317 = vmul.f32 %v1310, 0.125
    %v1318 = vmul.f32 %v1316, 0.125
    %v1319 = vmul.f32 %v1276, %v1276
    %v1320 = vmul.f32 %v1302, %v1302
    %v1321 = vrot.slane %v1319, 4
    %v1322 = vadd.f32 %v1319, %v1321
    %v1323 = vrot.slane %v1322, 2
    %v1324 = vadd.f32 %v1322, %v1323
    %v1325 = vrot.slane %v1324, 1
    %v1326 = vadd.f32 %v1324, %v1325
    %v1327 = vrot.slane %v1320, 4
    %v1328 = vadd.f32 %v1320, %v1327
    %v1329 = vrot.slane %v1328, 2
    %v1330 = vadd.f32 %v1328, %v1329
    %v1331 = vrot.slane %v1330, 1
    %v1332 = vadd.f32 %v1330, %v1331
    %v1333 = vmul.f32 %v1326, 0.125
    %v1334 = vmul.f32 %v1332, 0.125
    %v1335 = vmul.f32 %v1317, %v1317
    %v1336 = vmul.f32 %v1318, %v1318
    %v1337 = vsub.f32 %v1333, %v1335
    %v1338 = vsub.f32 %v1334, %v1336
    %v1339 = vmax.f32 %v1337, 0.0
    %v1340 = vmax.f32 %v1338, 0.0
    %s1341 = scalar_lea.vmem %s2, 6
    %v1342 = vld [vmem:[%s1341] sm:$0x3]
    %v1343 = vadd.f32 %v1339, 1e-05
    %v1344 = vadd.f32 %v1340, 1e-05
    %v1345 = vrsqrt.pop %v1343
    %v1346 = vmul.f32 %v1345, %v1343
    %v1347 = vmul.f32 %v1346, %v1345
    %v1348 = vmul.f32 0.5, %v1347
    %v1349 = vsub.f32 1.5, %v1348
    %v1350 = vmul.f32 %v1345, %v1349
    %vm1351 = vweird.f32 %v1343
    %vm1352 = vweird.f32 %v1345
    %vm1353 = vmor %vm1351, %vm1352
    %v1354 = vsel %vm1353, %v1345, %v1350
    %v1355 = vrsqrt.pop %v1344
    %v1356 = vmul.f32 %v1355, %v1344
    %v1357 = vmul.f32 %v1356, %v1355
    %v1358 = vmul.f32 0.5, %v1357
    %v1359 = vsub.f32 1.5, %v1358
    %v1360 = vmul.f32 %v1355, %v1359
    %vm1361 = vweird.f32 %v1344
    %vm1362 = vweird.f32 %v1355
    %vm1363 = vmor %vm1361, %vm1362
    %v1364 = vsel %vm1363, %v1355, %v1360
    %v1367 = vrot.slane %v1364, 7
    %v1368 = vsel %vm351, %v1354, %v1367
    %v1370 = vmul.f32 %v1342, %v1368
    %s1371 = scalar_lea.vmem %s3, 6
    %v1372 = vld [vmem:[%s1371] sm:$0x3]
    %v1374 = vperm.slane %v1370, 0
    %v1375 = vperm.slane %v1370, 1
    %v1378 = vmul.f32 %v1317, %v1374
    %v1379 = vmul.f32 %v1318, %v1375
    %v1382 = vrot.slane %v1379, 7
    %v1383 = vsel %vm351, %v1378, %v1382
    %v1385 = vsub.f32 %v1372, %v1383
    %v1386 = vmul.f32 %v1276, %v1374
    %v1387 = vmul.f32 %v1302, %v1375
    %v1389 = vperm.slane %v1385, 0
    %v1390 = vperm.slane %v1385, 1
    %v1393 = vadd.f32 %v1386, %v1389
    %v1394 = vadd.f32 %v1387, %v1390
    %v1395 = vmax.f32 %v1393, 0.0
    %v1396 = vmax.f32 %v1394, 0.0
    %v1397 = vpack.c.bf16 %v1395, %v1395
    %v1398 = vpack.c.bf16 %v1396, %v1396
    %s1399 = scalar_lea.vmem [#allocation3], 1024
    %v1400 = vld [vmem:[%s1399] sm:$0xff]
    %v1401 = vld [vmem:[%s1399 + $0x8] sm:$0xff]
    %v1402 = vld [vmem:[%s1399 + $0x10] sm:$0xff]
    %v1403 = vld [vmem:[%s1399 + $0x18] sm:$0xff]
    %v1404 = vld [vmem:[%s1399 + $0x20] sm:$0xff]
    %v1405 = vld [vmem:[%s1399 + $0x28] sm:$0xff]
    %v1406 = vld [vmem:[%s1399 + $0x30] sm:$0xff]
    %v1407 = vld [vmem:[%s1399 + $0x38] sm:$0xff]
    %v1408 = vld [vmem:[%s1399 + $0x40] sm:$0xff]
    %v1409 = vld [vmem:[%s1399 + $0x48] sm:$0xff]
    %v1410 = vld [vmem:[%s1399 + $0x50] sm:$0xff]
    %v1411 = vld [vmem:[%s1399 + $0x58] sm:$0xff]
    %v1412 = vld [vmem:[%s1399 + $0x60] sm:$0xff]
    %v1413 = vld [vmem:[%s1399 + $0x68] sm:$0xff]
    %v1414 = vld [vmem:[%s1399 + $0x70] sm:$0xff]
    %v1415 = vld [vmem:[%s1399 + $0x78] sm:$0xff]
    %v1416 = vld [vmem:[%s1399 + $0x80] sm:$0xff]
    %v1417 = vld [vmem:[%s1399 + $0x88] sm:$0xff]
    %v1418 = vld [vmem:[%s1399 + $0x90] sm:$0xff]
    %v1419 = vld [vmem:[%s1399 + $0x98] sm:$0xff]
    %v1420 = vld [vmem:[%s1399 + $0xa0] sm:$0xff]
    %v1421 = vld [vmem:[%s1399 + $0xa8] sm:$0xff]
    %v1422 = vld [vmem:[%s1399 + $0xb0] sm:$0xff]
    %v1423 = vld [vmem:[%s1399 + $0xb8] sm:$0xff]
    %v1424 = vld [vmem:[%s1399 + $0xc0] sm:$0xff]
    %v1425 = vld [vmem:[%s1399 + $0xc8] sm:$0xff]
    %v1426 = vld [vmem:[%s1399 + $0xd0] sm:$0xff]
    %v1427 = vld [vmem:[%s1399 + $0xd8] sm:$0xff]
    %v1428 = vld [vmem:[%s1399 + $0xe0] sm:$0xff]
    %v1429 = vld [vmem:[%s1399 + $0xe8] sm:$0xff]
    %v1430 = vld [vmem:[%s1399 + $0xf0] sm:$0xff]
    %v1431 = vld [vmem:[%s1399 + $0xf8] sm:$0xff]
    %v1464 = vunpack.c.l.b16 %v1400
    %v1465 = vunpack.c.h.b16 %v1400
    %v1466 = vunpack.c.l.b16 %v1401
    %v1467 = vunpack.c.h.b16 %v1401
    %v1468 = vunpack.c.l.b16 %v1402
    %v1469 = vunpack.c.h.b16 %v1402
    %v1470 = vunpack.c.l.b16 %v1403
    %v1471 = vunpack.c.h.b16 %v1403
    %v1472 = vunpack.c.l.b16 %v1404
    %v1473 = vunpack.c.h.b16 %v1404
    %v1474 = vunpack.c.l.b16 %v1405
    %v1475 = vunpack.c.h.b16 %v1405
    %v1476 = vunpack.c.l.b16 %v1406
    %v1477 = vunpack.c.h.b16 %v1406
    %v1478 = vunpack.c.l.b16 %v1407
    %v1479 = vunpack.c.h.b16 %v1407
    %v1480 = vunpack.c.l.b16 %v1408
    %v1481 = vunpack.c.h.b16 %v1408
    %v1482 = vunpack.c.l.b16 %v1409
    %v1483 = vunpack.c.h.b16 %v1409
    %v1484 = vunpack.c.l.b16 %v1410
    %v1485 = vunpack.c.h.b16 %v1410
    %v1486 = vunpack.c.l.b16 %v1411
    %v1487 = vunpack.c.h.b16 %v1411
    %v1488 = vunpack.c.l.b16 %v1412
    %v1489 = vunpack.c.h.b16 %v1412
    %v1490 = vunpack.c.l.b16 %v1413
    %v1491 = vunpack.c.h.b16 %v1413
    %v1492 = vunpack.c.l.b16 %v1414
    %v1493 = vunpack.c.h.b16 %v1414
    %v1494 = vunpack.c.l.b16 %v1415
    %v1495 = vunpack.c.h.b16 %v1415
    %v1496 = vunpack.c.l.b16 %v1416
    %v1497 = vunpack.c.h.b16 %v1416
    %v1498 = vunpack.c.l.b16 %v1417
    %v1499 = vunpack.c.h.b16 %v1417
    %v1500 = vunpack.c.l.b16 %v1418
    %v1501 = vunpack.c.h.b16 %v1418
    %v1502 = vunpack.c.l.b16 %v1419
    %v1503 = vunpack.c.h.b16 %v1419
    %v1504 = vunpack.c.l.b16 %v1420
    %v1505 = vunpack.c.h.b16 %v1420
    %v1506 = vunpack.c.l.b16 %v1421
    %v1507 = vunpack.c.h.b16 %v1421
    %v1508 = vunpack.c.l.b16 %v1422
    %v1509 = vunpack.c.h.b16 %v1422
    %v1510 = vunpack.c.l.b16 %v1423
    %v1511 = vunpack.c.h.b16 %v1423
    %v1512 = vunpack.c.l.b16 %v1424
    %v1513 = vunpack.c.h.b16 %v1424
    %v1514 = vunpack.c.l.b16 %v1425
    %v1515 = vunpack.c.h.b16 %v1425
    %v1516 = vunpack.c.l.b16 %v1426
    %v1517 = vunpack.c.h.b16 %v1426
    %v1518 = vunpack.c.l.b16 %v1427
    %v1519 = vunpack.c.h.b16 %v1427
    %v1520 = vunpack.c.l.b16 %v1428
    %v1521 = vunpack.c.h.b16 %v1428
    %v1522 = vunpack.c.l.b16 %v1429
    %v1523 = vunpack.c.h.b16 %v1429
    %v1524 = vunpack.c.l.b16 %v1430
    %v1525 = vunpack.c.h.b16 %v1430
    %v1526 = vunpack.c.l.b16 %v1431
    %v1527 = vunpack.c.h.b16 %v1431
    %v1528 = vpack.c.b16 %v1466, %v1464
    %v1529 = vpack.c.b16 %v1467, %v1465
    %v1530 = vpack.c.b16 %v1470, %v1468
    %v1531 = vpack.c.b16 %v1471, %v1469
    %v1532 = vpack.c.b16 %v1474, %v1472
    %v1533 = vpack.c.b16 %v1475, %v1473
    %v1534 = vpack.c.b16 %v1478, %v1476
    %v1535 = vpack.c.b16 %v1479, %v1477
    %v1536 = vpack.c.b16 %v1482, %v1480
    %v1537 = vpack.c.b16 %v1483, %v1481
    %v1538 = vpack.c.b16 %v1486, %v1484
    %v1539 = vpack.c.b16 %v1487, %v1485
    %v1540 = vpack.c.b16 %v1490, %v1488
    %v1541 = vpack.c.b16 %v1491, %v1489
    %v1542 = vpack.c.b16 %v1494, %v1492
    %v1543 = vpack.c.b16 %v1495, %v1493
    %v1544 = vpack.c.b16 %v1498, %v1496
    %v1545 = vpack.c.b16 %v1499, %v1497
    %v1546 = vpack.c.b16 %v1502, %v1500
    %v1547 = vpack.c.b16 %v1503, %v1501
    %v1548 = vpack.c.b16 %v1506, %v1504
    %v1549 = vpack.c.b16 %v1507, %v1505
    %v1550 = vpack.c.b16 %v1510, %v1508
    %v1551 = vpack.c.b16 %v1511, %v1509
    %v1552 = vpack.c.b16 %v1514, %v1512
    %v1553 = vpack.c.b16 %v1515, %v1513
    %v1554 = vpack.c.b16 %v1518, %v1516
    %v1555 = vpack.c.b16 %v1519, %v1517
    %v1556 = vpack.c.b16 %v1522, %v1520
    %v1557 = vpack.c.b16 %v1523, %v1521
    %v1558 = vpack.c.b16 %v1526, %v1524
    %v1559 = vpack.c.b16 %v1527, %v1525
    %1592 = vmatpush.bf16.msra.mxu0 %v1542
    %1593 = vmatpush.bf16.msra.mxu0 %v1540
    %1594 = vmatpush.bf16.msra.mxu0 %v1538
    %1595 = vmatpush.bf16.msra.mxu0 %v1536
    %1596 = vmatpush.bf16.msra.mxu0 %v1534
    %1597 = vmatpush.bf16.msra.mxu0 %v1532
    %1598 = vmatpush.bf16.msra.mxu0 %v1530
    %1599 = vmatpush.bf16.msra.mxu0 %v1528
    %1600 = vmatmul.bf16.gmra.mxu0 %v1397
    %v1601 = vpop.f32.mrf.mxu0
    %v1602 = vadd.f32 0.0, %v1601
    %v1603 = vpop.f32.mrf.mxu0
    %1604 = vdwg.mxu0
    %1605 = vmatpush.bf16.msra.mxu0 %v1558
    %1606 = vmatpush.bf16.msra.mxu0 %v1556
    %1607 = vmatpush.bf16.msra.mxu0 %v1554
    %1608 = vmatpush.bf16.msra.mxu0 %v1552
    %1609 = vmatpush.bf16.msra.mxu0 %v1550
    %1610 = vmatpush.bf16.msra.mxu0 %v1548
    %1611 = vmatpush.bf16.msra.mxu0 %v1546
    %1612 = vmatpush.bf16.msra.mxu0 %v1544
    %1613 = vmatmul.bf16.gmra.mxu0 %v1398
    %v1614 = vpop.f32.mrf.mxu0
    %v1615 = vadd.f32 %v1602, %v1614
    %v1616 = vpop.f32.mrf.mxu0
    %1617 = vdwg.mxu0
    %1618 = vmatpush.bf16.msra.mxu0 %v1543
    %1619 = vmatpush.bf16.msra.mxu0 %v1541
    %1620 = vmatpush.bf16.msra.mxu0 %v1539
    %1621 = vmatpush.bf16.msra.mxu0 %v1537
    %1622 = vmatpush.bf16.msra.mxu0 %v1535
    %1623 = vmatpush.bf16.msra.mxu0 %v1533
    %1624 = vmatpush.bf16.msra.mxu0 %v1531
    %1625 = vmatpush.bf16.msra.mxu0 %v1529
    %1626 = vmatmul.bf16.gmra.mxu0 %v1397
    %v1627 = vpop.f32.mrf.mxu0
    %v1628 = vadd.f32 0.0, %v1627
    %v1629 = vpop.f32.mrf.mxu0
    %1630 = vdwg.mxu0
    %1631 = vmatpush.bf16.msra.mxu0 %v1559
    %1632 = vmatpush.bf16.msra.mxu0 %v1557
    %1633 = vmatpush.bf16.msra.mxu0 %v1555
    %1634 = vmatpush.bf16.msra.mxu0 %v1553
    %1635 = vmatpush.bf16.msra.mxu0 %v1551
    %1636 = vmatpush.bf16.msra.mxu0 %v1549
    %1637 = vmatpush.bf16.msra.mxu0 %v1547
    %1638 = vmatpush.bf16.msra.mxu0 %v1545
    %1639 = vmatmul.bf16.gmra.mxu0 %v1398
    %v1640 = vpop.f32.mrf.mxu0
    %v1641 = vadd.f32 %v1628, %v1640
    %v1642 = vpop.f32.mrf.mxu0
    %1643 = vdwg.mxu0
    %v1644 = vrot.slane %v1615, 4
    %v1645 = vadd.f32 %v1615, %v1644
    %v1646 = vrot.slane %v1645, 2
    %v1647 = vadd.f32 %v1645, %v1646
    %v1648 = vrot.slane %v1647, 1
    %v1649 = vadd.f32 %v1647, %v1648
    %v1650 = vrot.slane %v1641, 4
    %v1651 = vadd.f32 %v1641, %v1650
    %v1652 = vrot.slane %v1651, 2
    %v1653 = vadd.f32 %v1651, %v1652
    %v1654 = vrot.slane %v1653, 1
    %v1655 = vadd.f32 %v1653, %v1654
    %v1656 = vmul.f32 %v1649, 0.125
    %v1657 = vmul.f32 %v1655, 0.125
    %v1658 = vmul.f32 %v1615, %v1615
    %v1659 = vmul.f32 %v1641, %v1641
    %v1660 = vrot.slane %v1658, 4
    %v1661 = vadd.f32 %v1658, %v1660
    %v1662 = vrot.slane %v1661, 2
    %v1663 = vadd.f32 %v1661, %v1662
    %v1664 = vrot.slane %v1663, 1
    %v1665 = vadd.f32 %v1663, %v1664
    %v1666 = vrot.slane %v1659, 4
    %v1667 = vadd.f32 %v1659, %v1666
    %v1668 = vrot.slane %v1667, 2
    %v1669 = vadd.f32 %v1667, %v1668
    %v1670 = vrot.slane %v1669, 1
    %v1671 = vadd.f32 %v1669, %v1670
    %v1672 = vmul.f32 %v1665, 0.125
    %v1673 = vmul.f32 %v1671, 0.125
    %v1674 = vmul.f32 %v1656, %v1656
    %v1675 = vmul.f32 %v1657, %v1657
    %v1676 = vsub.f32 %v1672, %v1674
    %v1677 = vsub.f32 %v1673, %v1675
    %v1678 = vmax.f32 %v1676, 0.0
    %v1679 = vmax.f32 %v1677, 0.0
    %s1680 = scalar_lea.vmem %s2, 8
    %v1681 = vld [vmem:[%s1680] sm:$0x3]
    %v1682 = vadd.f32 %v1678, 1e-05
    %v1683 = vadd.f32 %v1679, 1e-05
    %v1684 = vrsqrt.pop %v1682
    %v1685 = vmul.f32 %v1684, %v1682
    %v1686 = vmul.f32 %v1685, %v1684
    %v1687 = vmul.f32 0.5, %v1686
    %v1688 = vsub.f32 1.5, %v1687
    %v1689 = vmul.f32 %v1684, %v1688
    %vm1690 = vweird.f32 %v1682
    %vm1691 = vweird.f32 %v1684
    %vm1692 = vmor %vm1690, %vm1691
    %v1693 = vsel %vm1692, %v1684, %v1689
    %v1694 = vrsqrt.pop %v1683
    %v1695 = vmul.f32 %v1694, %v1683
    %v1696 = vmul.f32 %v1695, %v1694
    %v1697 = vmul.f32 0.5, %v1696
    %v1698 = vsub.f32 1.5, %v1697
    %v1699 = vmul.f32 %v1694, %v1698
    %vm1700 = vweird.f32 %v1683
    %vm1701 = vweird.f32 %v1694
    %vm1702 = vmor %vm1700, %vm1701
    %v1703 = vsel %vm1702, %v1694, %v1699
    %v1706 = vrot.slane %v1703, 7
    %v1707 = vsel %vm351, %v1693, %v1706
    %v1709 = vmul.f32 %v1681, %v1707
    %s1710 = scalar_lea.vmem %s3, 8
    %v1711 = vld [vmem:[%s1710] sm:$0x3]
    %v1713 = vperm.slane %v1709, 0
    %v1714 = vperm.slane %v1709, 1
    %v1717 = vmul.f32 %v1656, %v1713
    %v1718 = vmul.f32 %v1657, %v1714
    %v1721 = vrot.slane %v1718, 7
    %v1722 = vsel %vm351, %v1717, %v1721
    %v1724 = vsub.f32 %v1711, %v1722
    %v1725 = vmul.f32 %v1615, %v1713
    %v1726 = vmul.f32 %v1641, %v1714
    %v1728 = vperm.slane %v1724, 0
    %v1729 = vperm.slane %v1724, 1
    %v1732 = vadd.f32 %v1725, %v1728
    %v1733 = vadd.f32 %v1726, %v1729
    %v1734 = vmax.f32 %v1732, 0.0
    %v1735 = vmax.f32 %v1733, 0.0
    %v1736 = vld [vmem:[%s4] sm:$0x3]
    %v1737 = vunpack.c.l.bf16 %v1736
    %v1739 = vperm.slane %v1737, 0
    %v1740 = vperm.slane %v1737, 2
    %v1743 = vperm.slane %v1739, 0
    %v1744 = vperm.slane %v1740, 0
    %v1745 = vmul.f32 %v1734, %v1743
    %v1746 = vmul.f32 %v1735, %v1744
    %v1747 = vadd.f32 %v1745, %v1746
    %1748 = vadd.xlane.f32.xlu0 %v1747
    %v1749 = vpop.xlane.xlu0 %1748
    %v1750 = vld [vmem:[#allocation2] sm:$0x1]
    %v1752 = vperm.slane %v1750, 0
    %v1754 = vadd.f32 %v1749, %v1752
    %v1755 = vmax.f32 %v1754, 0.0
    %v1756 = vmin.f32 %v1755, 50.0
    %vm1757 = vcmask 7168
    %1758 = vst.msk [vmem:[%s6] sm:$0xff] %vm1757, %v1756
    // Predicated region
    $region30: #{mlp_forward_grouped.1} parent=1 // pred_check
      _
    $region31: #{mlp_forward_grouped.1} parent=1 // pred_check_branch
      %1760 = sbr.rel (0) target = $region33
    $region32: #{mlp_forward_grouped.1} parent=1 // pred_region
      _
    $region33: #{mlp_forward_grouped.1} parent=1 // pred_fallthru
      _
    // Predicated region
    $region34: #{mlp_forward_grouped.1} parent=1 // pred_check
      _
    $region35: #{mlp_forward_grouped.1} parent=1 // pred_check_branch
      %1762 = sbr.rel (0) target = $region37
    $region36: #{mlp_forward_grouped.1} parent=1 // pred_region
      _
    $region37: #{mlp_forward_grouped.1} parent=1 // pred_fallthru
      _
    %1763 = vsyncpa [#allocation4], 1

</llo_original>
